<compile_context>
chip_gen: v5e
topology: v5e:2x2
jax: 0.10.0
libtpu: 0.0.40
codegen_flags: <defaults>
</compile_context>

<pallas_src>
import jax
import jax.numpy as jnp
from jax.experimental import pallas as pl
from jax.experimental.pallas import tpu as pltpu

# --- dimensions (small, consistent with the module) ---
B, C, H, W = 2, 4, 16, 16          # input image batch, NCHW
IN_DIM = C * H * W                 # 1024 after flatten
FEAT = 256                         # backbone hidden width (hooked layer output)
NCLS = 10                          # backbone final output (discarded)
HID = 512                          # projection_hidden_size
PROJ = 64                          # projection_size
PROJ_PAD = 128                     # lane-dense padded output width
BN_EPS = 1e-5

# packed-vector layout: [bb1 | gamma | beta | bp2_pad]  (all lane-128 aligned)
_OFF_BB1 = 0
_OFF_GAMMA = FEAT
_OFF_BETA = FEAT + HID
_OFF_BP2 = FEAT + 2 * HID
_VEC_LEN = FEAT + 2 * HID + PROJ_PAD    # 1408


def netwrapper_kernel(x_ref, wb1_ref, wp1_ref, wp2_ref, vec_ref, out_ref):
    # static, lane-aligned views into the packed small-vector array (zero cost)
    bb1 = vec_ref[:, _OFF_BB1:_OFF_GAMMA]            # (1, FEAT)
    gamma = vec_ref[:, _OFF_GAMMA:_OFF_BETA]         # (1, HID)
    beta = vec_ref[:, _OFF_BETA:_OFF_BP2]            # (1, HID)
    bp2 = vec_ref[:, _OFF_BP2:_OFF_BP2 + PROJ_PAD]   # (1, PROJ_PAD)

    # ---- backbone up to the hooked layer: Linear -> ReLU ----
    # bf16 x bf16 on the MXU, f32 accumulation.
    h = jnp.dot(x_ref[...], wb1_ref[...],
                preferred_element_type=jnp.float32) + bb1                 # (B, FEAT) f32
    h = jnp.maximum(h, 0.0)                                               # hooked ReLU == representation

    # ---- projector MLP: Linear (bias cancelled by BN) -> BN(train) -> ReLU -> Linear ----
    z = jnp.dot(h.astype(jnp.bfloat16), wp1_ref[...],
                preferred_element_type=jnp.float32)                       # (B, HID) f32
    mean = jnp.mean(z, axis=0, keepdims=True)                             # batch mean
    zc = z - mean
    var = jnp.mean(zc * zc, axis=0, keepdims=True)                        # biased batch var
    scale = gamma * jax.lax.rsqrt(var + BN_EPS)                           # fused BN scale (1, HID)
    a = jnp.maximum(zc * scale + beta, 0.0)                               # ReLU

    out = jnp.dot(a.astype(jnp.bfloat16), wp2_ref[...],
                  preferred_element_type=jnp.float32) + bp2               # (B, PROJ_PAD) f32
    out_ref[...] = out                                                    # lane-dense store


def netwrapper_forward(x, params):
    """x: (B, C, H, W) float32, NCHW. Returns projection (B, PROJ) float32."""
    b = x.shape[0]
    x_flat = x.reshape(b, -1).astype(jnp.bfloat16)                        # (B, IN_DIM) bf16 LHS

    args = (
        x_flat,
        params["wb1"],        # (IN_DIM, FEAT)  bf16
        params["wp1"],        # (FEAT, HID)     bf16
        params["wp2_pad"],    # (HID, PROJ_PAD) bf16
        params["vec"],        # (1, _VEC_LEN)   f32   [bb1|gamma|beta|bp2_pad]
    )

    vmem_spec = pl.BlockSpec(memory_space=pltpu.MemorySpace.VMEM)          # full array, no pipelining

    flops = 2 * b * (IN_DIM * FEAT + FEAT * HID + HID * PROJ_PAD)
    bytes_accessed = sum(int(a.size) * a.dtype.itemsize for a in args) + b * PROJ_PAD * 4

    out_pad = pl.pallas_call(
        netwrapper_kernel,
        out_shape=jax.ShapeDtypeStruct((b, PROJ_PAD), jnp.float32),
        in_specs=[vmem_spec] * len(args),
        out_specs=vmem_spec,
        cost_estimate=pl.CostEstimate(
            flops=flops, transcendentals=HID, bytes_accessed=bytes_accessed),
    )(*args)

    # TODO(synk): drop this slice if the consumer accepts the (B,128) padded projection.
    return out_pad[:, :PROJ]


def init_params(key):
    ks = jax.random.split(key, 3)

    def lin(k, fan_in, fan_out):
        bound = 1.0 / (fan_in ** 0.5)
        kw, kb = jax.random.split(k)
        w = jax.random.uniform(kw, (fan_in, fan_out), jnp.float32, -bound, bound)
        bb = jax.random.uniform(kb, (1, fan_out), jnp.float32, -bound, bound)
        return w, bb

    wb1, bb1 = lin(ks[0], IN_DIM, FEAT)     # backbone Linear (hooked ReLU follows)
    wp1, bp1 = lin(ks[1], FEAT, HID)        # projector Linear 1 (bias cancelled by BN)
    wp2, bp2 = lin(ks[2], HID, PROJ)        # projector Linear 2

    # bf16 weights (kernel is weight-DMA bound); small vectors stay f32, packed.
    wb1_bf16 = wb1.astype(jnp.bfloat16)
    wp1_bf16 = wp1.astype(jnp.bfloat16)
    wp2_pad = jnp.zeros((HID, PROJ_PAD), jnp.bfloat16).at[:, :PROJ].set(wp2.astype(jnp.bfloat16))

    gamma = jnp.ones((1, HID), jnp.float32)   # BatchNorm1d weight init
    beta = jnp.zeros((1, HID), jnp.float32)   # BatchNorm1d bias init
    bp2_pad = jnp.zeros((1, PROJ_PAD), jnp.float32).at[:, :PROJ].set(bp2)

    vec = jnp.concatenate([bb1, gamma, beta, bp2_pad], axis=1)            # (1, 1408)
    assert vec.shape == (1, _VEC_LEN)

    return dict(wb1=wb1_bf16, wp1=wp1_bf16, wp2_pad=wp2_pad, vec=vec,
                # kept only for the reference check:
                bb1=bb1, bp1=bp1, gamma=gamma, beta=beta, bp2=bp2)


if __name__ == "__main__":
    key = jax.random.PRNGKey(0)
    kx, kp = jax.random.split(key)
    x = jax.random.normal(kx, (B, C, H, W), jnp.float32)   # NCHW input
    params = init_params(kp)

    out = netwrapper_forward(x, params)
    out = jax.block_until_ready(out)
    assert out.shape == (B, PROJ) and out.dtype == jnp.float32

    # Pure-JAX reference of the same math. Uses the SAME bf16-quantized weights
    # and bf16-cast matmul LHS (mirroring the kernel's numerics, f32 accum),
    # and *includes* bp1 to demonstrate training-mode BN exactly cancels it,
    # so dropping bp1 in the kernel is not a behavior change.
    xf = x.reshape(B, -1).astype(jnp.bfloat16).astype(jnp.float32)
    wb1 = params["wb1"].astype(jnp.float32)
    wp1 = params["wp1"].astype(jnp.float32)
    wp2 = params["wp2_pad"].astype(jnp.float32)[:, :PROJ]
    h = jnp.maximum(xf @ wb1 + params["bb1"], 0.0)
    hb = h.astype(jnp.bfloat16).astype(jnp.float32)
    z = hb @ wp1 + params["bp1"]
    m = z.mean(0, keepdims=True)
    v = ((z - m) ** 2).mean(0, keepdims=True)
    a = jnp.maximum((z - m) * jax.lax.rsqrt(v + BN_EPS) * params["gamma"] + params["beta"], 0.0)
    ab = a.astype(jnp.bfloat16).astype(jnp.float32)
    ref = ab @ wp2 + params["bp2"]
    assert jnp.allclose(out, ref, atol=5e-3, rtol=5e-3), float(jnp.max(jnp.abs(out - ref)))

    print("KERNEL_OK")
</pallas_src>

<mosaic_0001>
module attributes {stable_mosaic.version = 11 : i64} {
  func.func @netwrapper_kernel(%arg0: memref<2x1024xbf16, #tpu.memory_space<vmem>>, %arg1: memref<1024x256xbf16, #tpu.memory_space<vmem>>, %arg2: memref<256x512xbf16, #tpu.memory_space<vmem>>, %arg3: memref<512x128xbf16, #tpu.memory_space<vmem>>, %arg4: memref<1x1408xf32, #tpu.memory_space<vmem>>, %arg5: memref<2x128xf32, #tpu.memory_space<vmem>>) attributes {dimension_semantics = [], scalar_prefetch = 0 : i64, scratch_operands = 0 : i64, tpu.core_type = #tpu.core_type<tc>} {
    %c0 = arith.constant 0 : index
    %c0_0 = arith.constant 0 : index
    %0 = vector.load %arg4[%c0, %c0_0] : memref<1x1408xf32, #tpu.memory_space<vmem>>, vector<1x256xf32>
    %c0_1 = arith.constant 0 : index
    %c256 = arith.constant 256 : index
    %1 = vector.load %arg4[%c0_1, %c256] : memref<1x1408xf32, #tpu.memory_space<vmem>>, vector<1x512xf32>
    %c0_2 = arith.constant 0 : index
    %c768 = arith.constant 768 : index
    %2 = vector.load %arg4[%c0_2, %c768] : memref<1x1408xf32, #tpu.memory_space<vmem>>, vector<1x512xf32>
    %c0_3 = arith.constant 0 : index
    %c1280 = arith.constant 1280 : index
    %3 = vector.load %arg4[%c0_3, %c1280] : memref<1x1408xf32, #tpu.memory_space<vmem>>, vector<1x128xf32>
    %c0_4 = arith.constant 0 : index
    %c0_5 = arith.constant 0 : index
    %4 = vector.load %arg0[%c0_4, %c0_5] : memref<2x1024xbf16, #tpu.memory_space<vmem>>, vector<2x1024xbf16>
    %c0_6 = arith.constant 0 : index
    %c0_7 = arith.constant 0 : index
    %5 = vector.load %arg1[%c0_6, %c0_7] : memref<1024x256xbf16, #tpu.memory_space<vmem>>, vector<1024x256xbf16>
    %cst = arith.constant dense<0.000000e+00> : vector<2x256xf32>
    %6 = tpu.matmul %4, %5, %cst {dimension_numbers = #tpu.dot_dimension_numbers<[1], [0], [0], [1], [0, 0, 1, 1], [], []>} : vector<2x1024xbf16>, vector<1024x256xbf16>, vector<2x256xf32> -> vector<2x256xf32>
    %7 = vector.broadcast %0 : vector<1x256xf32> to vector<2x256xf32>
    %8 = arith.addf %6, %7 : vector<2x256xf32>
    %cst_8 = arith.constant 0.000000e+00 : f32
    %9 = vector.broadcast %cst_8 : f32 to vector<2x256xf32>
    %10 = arith.maximumf %8, %9 : vector<2x256xf32>
    %11 = arith.truncf %10 : vector<2x256xf32> to vector<2x256xbf16>
    %c0_9 = arith.constant 0 : index
    %c0_10 = arith.constant 0 : index
    %12 = vector.load %arg2[%c0_9, %c0_10] : memref<256x512xbf16, #tpu.memory_space<vmem>>, vector<256x512xbf16>
    %cst_11 = arith.constant dense<0.000000e+00> : vector<2x512xf32>
    %13 = tpu.matmul %11, %12, %cst_11 {dimension_numbers = #tpu.dot_dimension_numbers<[1], [0], [0], [1], [0, 0, 1, 1], [], []>} : vector<2x256xbf16>, vector<256x512xbf16>, vector<2x512xf32> -> vector<2x512xf32>
    %cst_12 = arith.constant dense<0.000000e+00> : vector<512xf32>
    %14 = vector.multi_reduction <add>, %13, %cst_12 [0] : vector<2x512xf32> to vector<512xf32>
    %15 = vector.shape_cast %14 : vector<512xf32> to vector<1x512xf32>
    %cst_13 = arith.constant 2.000000e+00 : f32
    %16 = vector.broadcast %cst_13 : f32 to vector<1x512xf32>
    %17 = arith.divf %15, %16 : vector<1x512xf32>
    %18 = vector.broadcast %17 : vector<1x512xf32> to vector<2x512xf32>
    %19 = arith.subf %13, %18 : vector<2x512xf32>
    %20 = arith.mulf %19, %19 : vector<2x512xf32>
    %cst_14 = arith.constant dense<0.000000e+00> : vector<512xf32>
    %21 = vector.multi_reduction <add>, %20, %cst_14 [0] : vector<2x512xf32> to vector<512xf32>
    %22 = vector.shape_cast %21 : vector<512xf32> to vector<1x512xf32>
    %cst_15 = arith.constant 2.000000e+00 : f32
    %23 = vector.broadcast %cst_15 : f32 to vector<1x512xf32>
    %24 = arith.divf %22, %23 : vector<1x512xf32>
    %cst_16 = arith.constant 9.99999974E-6 : f32
    %25 = vector.broadcast %cst_16 : f32 to vector<1x512xf32>
    %26 = arith.addf %24, %25 : vector<1x512xf32>
    %27 = math.rsqrt %26 : vector<1x512xf32>
    %28 = arith.mulf %1, %27 : vector<1x512xf32>
    %29 = vector.broadcast %28 : vector<1x512xf32> to vector<2x512xf32>
    %30 = arith.mulf %19, %29 : vector<2x512xf32>
    %31 = vector.broadcast %2 : vector<1x512xf32> to vector<2x512xf32>
    %32 = arith.addf %30, %31 : vector<2x512xf32>
    %cst_17 = arith.constant 0.000000e+00 : f32
    %33 = vector.broadcast %cst_17 : f32 to vector<2x512xf32>
    %34 = arith.maximumf %32, %33 : vector<2x512xf32>
    %35 = arith.truncf %34 : vector<2x512xf32> to vector<2x512xbf16>
    %c0_18 = arith.constant 0 : index
    %c0_19 = arith.constant 0 : index
    %36 = vector.load %arg3[%c0_18, %c0_19] : memref<512x128xbf16, #tpu.memory_space<vmem>>, vector<512x128xbf16>
    %cst_20 = arith.constant dense<0.000000e+00> : vector<2x128xf32>
    %37 = tpu.matmul %35, %36, %cst_20 {dimension_numbers = #tpu.dot_dimension_numbers<[1], [0], [0], [1], [0, 0, 1, 1], [], []>} : vector<2x512xbf16>, vector<512x128xbf16>, vector<2x128xf32> -> vector<2x128xf32>
    %38 = vector.broadcast %3 : vector<1x128xf32> to vector<2x128xf32>
    %39 = arith.addf %37, %38 : vector<2x128xf32>
    %c0_21 = arith.constant 0 : index
    %c0_22 = arith.constant 0 : index
    %40 = vector.load %arg5[%c0_21, %c0_22] : memref<2x128xf32, #tpu.memory_space<vmem>>, vector<2x128xf32>
    tpu.vector_store %arg5[%c0_21, %c0_22], %39 {strides = array<i32>} : memref<2x128xf32, #tpu.memory_space<vmem>>, vector<2x128xf32>,
    return
  }
}

</mosaic_0001>

<llo_original>
// kernel: tpu_custom_call.1
$region0: #{tpu_custom_call.1}
  #allocation0 [shape = 'u32[]', space=smem, size = 0x4, offset = 0x4, fixed_abs, tag = 'smem constant byte address 0x4 - core index']
  #allocation1 [shape = 'u32[72,128]{1,0:T(1,128)}', space=vmem, size = 0x9000, scoped, tag = 'internal scratch']
  %s0 = inlined_call_operand.hbm [shape: bf16[2,1024], index: 0, kind: input, shape index: {}]
  %s1 = inlined_call_operand.hbm [shape: bf16[1024,256], index: 1, kind: input, shape index: {}]
  %s2 = inlined_call_operand.hbm [shape: bf16[256,512], index: 2, kind: input, shape index: {}]
  %s3 = inlined_call_operand.hbm [shape: bf16[512,128], index: 3, kind: input, shape index: {}]
  %s4 = inlined_call_operand.hbm [shape: f32[1,1408], index: 4, kind: input, shape index: {}]
  %s5 = inlined_call_operand.hbm [shape: f32[2,128], index: 5, kind: output, shape index: {}]
  %s6 = sld [smem:[#allocation0]]
  $region50: #{tpu_custom_call.1} parent=0
    _
  %s8 = ssub.s32 1, %s6
  %s9 = scalar_select 0, %s8, %s6
  $region1: #{tpu_custom_call.1} parent=0
    #allocation2 [shape = 'u8[4096]{0}', space=vmem, size = 0x1000, scoped, tag = 'input window, operand 0, single buffered']
    #allocation3 [shape = 's32[1]{0}', space=sflag, size = 0x4, scoped, tag = 'scoped memory for tpu_custom_call.1']
    #allocation4 [shape = 's32[1]{0}', space=sflag, size = 0x4, scoped, tag = 'scoped memory for tpu_custom_call.1']
    #allocation5 [shape = 'u8[524288]{0}', space=vmem, size = 0x80000, scoped, tag = 'input window, operand 1, single buffered']
    #allocation6 [shape = 's32[1]{0}', space=sflag, size = 0x4, scoped, tag = 'scoped memory for tpu_custom_call.1']
    #allocation7 [shape = 'u8[262144]{0}', space=vmem, size = 0x40000, scoped, tag = 'input window, operand 2, single buffered']
    #allocation8 [shape = 'u8[131072]{0}', space=vmem, size = 0x20000, scoped, tag = 'input window, operand 3, single buffered']
    #allocation9 [shape = 's32[1]{0}', space=sflag, size = 0x4, scoped, tag = 'scoped memory for tpu_custom_call.1']
    #allocation10 [shape = 'u8[5632]{0}', space=vmem, size = 0x1800, scoped, tag = 'input window, operand 4, single buffered']
    #allocation11 [shape = 'u8[1024]{0}', space=vmem, size = 0x400, scoped, tag = 'output window, operand 0, single buffered']
    %10 = vsyncpa [#allocation3], 0
    %11 = vsyncpa [#allocation6], 0
    %12 = vsyncpa [#allocation9], 0
    %13 = vsyncpa [#allocation4], 0
    // Predicated region
    $region2: #{tpu_custom_call.1} parent=1 // pred_check
      _
    $region3: #{tpu_custom_call.1} parent=1 // pred_check_branch
      %15 = sbr.rel (0) target = $region5
    $region4: #{tpu_custom_call.1} parent=1 // pred_region
      %17 = vsyncadd [#allocation3], 0
      %s19 = sshll.u32 %s0, 4
      %s20 = int_to_ptr.hbm [resolvable:$true] %s19
      %s21 = sshll.u32 [#allocation2], 4
      %s22 = int_to_ptr.vmem [resolvable:$true] %s21
      %24 = dma.hbm_to_vmem [thread:$0]  %s20, 128, %s22, [#allocation3]
    $region5: #{tpu_custom_call.1} parent=1 // pred_fallthru
      _
    // Predicated region
    $region6: #{tpu_custom_call.1} parent=1 // pred_check
      _
    $region7: #{tpu_custom_call.1} parent=1 // pred_check_branch
      %26 = sbr.rel (0) target = $region9
    $region8: #{tpu_custom_call.1} parent=1 // pred_region
      %28 = vsyncadd [#allocation6], 0
      %s29 = sshll.u32 %s1, 4
      %s30 = int_to_ptr.hbm [resolvable:$true] %s29
      %s31 = sshll.u32 [#allocation5], 4
      %s32 = int_to_ptr.vmem [resolvable:$true] %s31
      %37 = dma.hbm_to_vmem [thread:$0]  %s30, 16384, %s32, [#allocation6], 128, 128, 8
    $region9: #{tpu_custom_call.1} parent=1 // pred_fallthru
      _
    // Predicated region
    $region10: #{tpu_custom_call.1} parent=1 // pred_check
      _
    $region11: #{tpu_custom_call.1} parent=1 // pred_check_branch
      %39 = sbr.rel (0) target = $region13
    $region12: #{tpu_custom_call.1} parent=1 // pred_region
      %41 = vsyncadd [#allocation6], 0
      %s42 = sshll.u32 %s2, 4
      %s43 = int_to_ptr.hbm [resolvable:$true] %s42
      %s44 = sshll.u32 [#allocation7], 4
      %s45 = int_to_ptr.vmem [resolvable:$true] %s44
      %50 = dma.hbm_to_vmem [thread:$0]  %s43, 8192, %s45, [#allocation6], 256, 256, 16
    $region13: #{tpu_custom_call.1} parent=1 // pred_fallthru
      _
    // Predicated region
    $region14: #{tpu_custom_call.1} parent=1 // pred_check
      _
    $region15: #{tpu_custom_call.1} parent=1 // pred_check_branch
      %52 = sbr.rel (0) target = $region17
    $region16: #{tpu_custom_call.1} parent=1 // pred_region
      %54 = vsyncadd [#allocation9], 0
      %s55 = sshll.u32 %s3, 4
      %s56 = int_to_ptr.hbm [resolvable:$true] %s55
      %s57 = sshll.u32 [#allocation8], 4
      %s58 = int_to_ptr.vmem [resolvable:$true] %s57
      %63 = dma.hbm_to_vmem [thread:$0]  %s56, 4096, %s58, [#allocation9], 64, 64, 4
    $region17: #{tpu_custom_call.1} parent=1 // pred_fallthru
      _
    // Predicated region
    $region18: #{tpu_custom_call.1} parent=1 // pred_check
      _
    $region19: #{tpu_custom_call.1} parent=1 // pred_check_branch
      %65 = sbr.rel (0) target = $region21
    $region20: #{tpu_custom_call.1} parent=1 // pred_region
      %67 = vsyncadd [#allocation9], 0
      %s69 = sshll.u32 %s4, 4
      %s70 = int_to_ptr.hbm [resolvable:$true] %s69
      %s71 = sshll.u32 [#allocation10], 4
      %s72 = int_to_ptr.vmem [resolvable:$true] %s71
      %74 = dma.hbm_to_vmem [thread:$0]  %s70, 176, %s72, [#allocation9]
    $region21: #{tpu_custom_call.1} parent=1 // pred_fallthru
      _
    // Predicated region
    $region22: #{tpu_custom_call.1} parent=1 // pred_check
      _
    $region23: #{tpu_custom_call.1} parent=1 // pred_check_branch
      %76 = sbr.rel (0) target = $region25
    $region24: #{tpu_custom_call.1} parent=1 // pred_region
      %78 = dma.done [#allocation3], 128
    $region25: #{tpu_custom_call.1} parent=1 // pred_fallthru
      _
    // Predicated region
    $region26: #{tpu_custom_call.1} parent=1 // pred_check
      _
    $region27: #{tpu_custom_call.1} parent=1 // pred_check_branch
      %80 = sbr.rel (0) target = $region29
    $region28: #{tpu_custom_call.1} parent=1 // pred_region
      %82 = dma.done [#allocation6], 16384
    $region29: #{tpu_custom_call.1} parent=1 // pred_fallthru
      _
    // Predicated region
    $region30: #{tpu_custom_call.1} parent=1 // pred_check
      _
    $region31: #{tpu_custom_call.1} parent=1 // pred_check_branch
      %84 = sbr.rel (0) target = $region33
    $region32: #{tpu_custom_call.1} parent=1 // pred_region
      %86 = dma.done [#allocation6], 8192
    $region33: #{tpu_custom_call.1} parent=1 // pred_fallthru
      _
    // Predicated region
    $region34: #{tpu_custom_call.1} parent=1 // pred_check
      _
    $region35: #{tpu_custom_call.1} parent=1 // pred_check_branch
      %88 = sbr.rel (0) target = $region37
    $region36: #{tpu_custom_call.1} parent=1 // pred_region
      %90 = dma.done [#allocation9], 4096
    $region37: #{tpu_custom_call.1} parent=1 // pred_fallthru
      _
    // Predicated region
    $region38: #{tpu_custom_call.1} parent=1 // pred_check
      _
    $region39: #{tpu_custom_call.1} parent=1 // pred_check_branch
      %92 = sbr.rel (0) target = $region41
    $region40: #{tpu_custom_call.1} parent=1 // pred_region
      %94 = dma.done [#allocation9], 176
    $region41: #{tpu_custom_call.1} parent=1 // pred_fallthru
      _
    %v95 = vld [vmem:[#allocation10] sm:$0x3]
    %v96 = vld [vmem:[#allocation10 + $0x2] sm:$0xf]
    %v97 = vld [vmem:[#allocation10 + $0x6] sm:$0xf]
    %v98 = vld [vmem:[#allocation10 + $0xa] sm:$0x1]
    %v99 = vld [vmem:[#allocation2] sm:$0xff]
    %v100 = vld [vmem:[#allocation5] sm:$0xff]
    %v101 = vld [vmem:[#allocation5 + $0x8] sm:$0xff]
    %v102 = vld [vmem:[#allocation5 + $0x10] sm:$0xff]
    %v103 = vld [vmem:[#allocation5 + $0x18] sm:$0xff]
    %v104 = vld [vmem:[#allocation5 + $0x20] sm:$0xff]
    %v105 = vld [vmem:[#allocation5 + $0x28] sm:$0xff]
    %v106 = vld [vmem:[#allocation5 + $0x30] sm:$0xff]
    %v107 = vld [vmem:[#allocation5 + $0x38] sm:$0xff]
    %v108 = vld [vmem:[#allocation5 + $0x40] sm:$0xff]
    %v109 = vld [vmem:[#allocation5 + $0x48] sm:$0xff]
    %v110 = vld [vmem:[#allocation5 + $0x50] sm:$0xff]
    %v111 = vld [vmem:[#allocation5 + $0x58] sm:$0xff]
    %v112 = vld [vmem:[#allocation5 + $0x60] sm:$0xff]
    %v113 = vld [vmem:[#allocation5 + $0x68] sm:$0xff]
    %v114 = vld [vmem:[#allocation5 + $0x70] sm:$0xff]
    %v115 = vld [vmem:[#allocation5 + $0x78] sm:$0xff]
    %v116 = vld [vmem:[#allocation5 + $0x80] sm:$0xff]
    %v117 = vld [vmem:[#allocation5 + $0x88] sm:$0xff]
    %v118 = vld [vmem:[#allocation5 + $0x90] sm:$0xff]
    %v119 = vld [vmem:[#allocation5 + $0x98] sm:$0xff]
    %v120 = vld [vmem:[#allocation5 + $0xa0] sm:$0xff]
    %v121 = vld [vmem:[#allocation5 + $0xa8] sm:$0xff]
    %v122 = vld [vmem:[#allocation5 + $0xb0] sm:$0xff]
    %v123 = vld [vmem:[#allocation5 + $0xb8] sm:$0xff]
    %v124 = vld [vmem:[#allocation5 + $0xc0] sm:$0xff]
    %v125 = vld [vmem:[#allocation5 + $0xc8] sm:$0xff]
    %v126 = vld [vmem:[#allocation5 + $0xd0] sm:$0xff]
    %v127 = vld [vmem:[#allocation5 + $0xd8] sm:$0xff]
    %v128 = vld [vmem:[#allocation5 + $0xe0] sm:$0xff]
    %v129 = vld [vmem:[#allocation5 + $0xe8] sm:$0xff]
    %v130 = vld [vmem:[#allocation5 + $0xf0] sm:$0xff]
    %v131 = vld [vmem:[#allocation5 + $0xf8] sm:$0xff]
    %v132 = vld [vmem:[#allocation5 + $0x100] sm:$0xff]
    %v133 = vld [vmem:[#allocation5 + $0x108] sm:$0xff]
    %v134 = vld [vmem:[#allocation5 + $0x110] sm:$0xff]
    %v135 = vld [vmem:[#allocation5 + $0x118] sm:$0xff]
    %v136 = vld [vmem:[#allocation5 + $0x120] sm:$0xff]
    %v137 = vld [vmem:[#allocation5 + $0x128] sm:$0xff]
    %v138 = vld [vmem:[#allocation5 + $0x130] sm:$0xff]
    %v139 = vld [vmem:[#allocation5 + $0x138] sm:$0xff]
    %v140 = vld [vmem:[#allocation5 + $0x140] sm:$0xff]
    %v141 = vld [vmem:[#allocation5 + $0x148] sm:$0xff]
    %v142 = vld [vmem:[#allocation5 + $0x150] sm:$0xff]
    %v143 = vld [vmem:[#allocation5 + $0x158] sm:$0xff]
    %v144 = vld [vmem:[#allocation5 + $0x160] sm:$0xff]
    %v145 = vld [vmem:[#allocation5 + $0x168] sm:$0xff]
    %v146 = vld [vmem:[#allocation5 + $0x170] sm:$0xff]
    %v147 = vld [vmem:[#allocation5 + $0x178] sm:$0xff]
    %v148 = vld [vmem:[#allocation5 + $0x180] sm:$0xff]
    %v149 = vld [vmem:[#allocation5 + $0x188] sm:$0xff]
    %v150 = vld [vmem:[#allocation5 + $0x190] sm:$0xff]
    %v151 = vld [vmem:[#allocation5 + $0x198] sm:$0xff]
    %v152 = vld [vmem:[#allocation5 + $0x1a0] sm:$0xff]
    %v153 = vld [vmem:[#allocation5 + $0x1a8] sm:$0xff]
    %v154 = vld [vmem:[#allocation5 + $0x1b0] sm:$0xff]
    %v155 = vld [vmem:[#allocation5 + $0x1b8] sm:$0xff]
    %v156 = vld [vmem:[#allocation5 + $0x1c0] sm:$0xff]
    %v157 = vld [vmem:[#allocation5 + $0x1c8] sm:$0xff]
    %v158 = vld [vmem:[#allocation5 + $0x1d0] sm:$0xff]
    %v159 = vld [vmem:[#allocation5 + $0x1d8] sm:$0xff]
    %v160 = vld [vmem:[#allocation5 + $0x1e0] sm:$0xff]
    %v161 = vld [vmem:[#allocation5 + $0x1e8] sm:$0xff]
    %v162 = vld [vmem:[#allocation5 + $0x1f0] sm:$0xff]
    %v163 = vld [vmem:[#allocation5 + $0x1f8] sm:$0xff]
    %v164 = vld [vmem:[#allocation5 + $0x200] sm:$0xff]
    %v165 = vld [vmem:[#allocation5 + $0x208] sm:$0xff]
    %v166 = vld [vmem:[#allocation5 + $0x210] sm:$0xff]
    %v167 = vld [vmem:[#allocation5 + $0x218] sm:$0xff]
    %v168 = vld [vmem:[#allocation5 + $0x220] sm:$0xff]
    %v169 = vld [vmem:[#allocation5 + $0x228] sm:$0xff]
    %v170 = vld [vmem:[#allocation5 + $0x230] sm:$0xff]
    %v171 = vld [vmem:[#allocation5 + $0x238] sm:$0xff]
    %v172 = vld [vmem:[#allocation5 + $0x240] sm:$0xff]
    %v173 = vld [vmem:[#allocation5 + $0x248] sm:$0xff]
    %v174 = vld [vmem:[#allocation5 + $0x250] sm:$0xff]
    %v175 = vld [vmem:[#allocation5 + $0x258] sm:$0xff]
    %v176 = vld [vmem:[#allocation5 + $0x260] sm:$0xff]
    %v177 = vld [vmem:[#allocation5 + $0x268] sm:$0xff]
    %v178 = vld [vmem:[#allocation5 + $0x270] sm:$0xff]
    %v179 = vld [vmem:[#allocation5 + $0x278] sm:$0xff]
    %v180 = vld [vmem:[#allocation5 + $0x280] sm:$0xff]
    %v181 = vld [vmem:[#allocation5 + $0x288] sm:$0xff]
    %v182 = vld [vmem:[#allocation5 + $0x290] sm:$0xff]
    %v183 = vld [vmem:[#allocation5 + $0x298] sm:$0xff]
    %v184 = vld [vmem:[#allocation5 + $0x2a0] sm:$0xff]
    %v185 = vld [vmem:[#allocation5 + $0x2a8] sm:$0xff]
    %v186 = vld [vmem:[#allocation5 + $0x2b0] sm:$0xff]
    %v187 = vld [vmem:[#allocation5 + $0x2b8] sm:$0xff]
    %v188 = vld [vmem:[#allocation5 + $0x2c0] sm:$0xff]
    %v189 = vld [vmem:[#allocation5 + $0x2c8] sm:$0xff]
    %v190 = vld [vmem:[#allocation5 + $0x2d0] sm:$0xff]
    %v191 = vld [vmem:[#allocation5 + $0x2d8] sm:$0xff]
    %v192 = vld [vmem:[#allocation5 + $0x2e0] sm:$0xff]
    %v193 = vld [vmem:[#allocation5 + $0x2e8] sm:$0xff]
    %v194 = vld [vmem:[#allocation5 + $0x2f0] sm:$0xff]
    %v195 = vld [vmem:[#allocation5 + $0x2f8] sm:$0xff]
    %v196 = vld [vmem:[#allocation5 + $0x300] sm:$0xff]
    %v197 = vld [vmem:[#allocation5 + $0x308] sm:$0xff]
    %v198 = vld [vmem:[#allocation5 + $0x310] sm:$0xff]
    %v199 = vld [vmem:[#allocation5 + $0x318] sm:$0xff]
    %v200 = vld [vmem:[#allocation5 + $0x320] sm:$0xff]
    %v201 = vld [vmem:[#allocation5 + $0x328] sm:$0xff]
    %v202 = vld [vmem:[#allocation5 + $0x330] sm:$0xff]
    %v203 = vld [vmem:[#allocation5 + $0x338] sm:$0xff]
    %v204 = vld [vmem:[#allocation5 + $0x340] sm:$0xff]
    %v205 = vld [vmem:[#allocation5 + $0x348] sm:$0xff]
    %v206 = vld [vmem:[#allocation5 + $0x350] sm:$0xff]
    %v207 = vld [vmem:[#allocation5 + $0x358] sm:$0xff]
    %v208 = vld [vmem:[#allocation5 + $0x360] sm:$0xff]
    %v209 = vld [vmem:[#allocation5 + $0x368] sm:$0xff]
    %v210 = vld [vmem:[#allocation5 + $0x370] sm:$0xff]
    %v211 = vld [vmem:[#allocation5 + $0x378] sm:$0xff]
    %v212 = vld [vmem:[#allocation5 + $0x380] sm:$0xff]
    %v213 = vld [vmem:[#allocation5 + $0x388] sm:$0xff]
    %v214 = vld [vmem:[#allocation5 + $0x390] sm:$0xff]
    %v215 = vld [vmem:[#allocation5 + $0x398] sm:$0xff]
    %v216 = vld [vmem:[#allocation5 + $0x3a0] sm:$0xff]
    %v217 = vld [vmem:[#allocation5 + $0x3a8] sm:$0xff]
    %v218 = vld [vmem:[#allocation5 + $0x3b0] sm:$0xff]
    %v219 = vld [vmem:[#allocation5 + $0x3b8] sm:$0xff]
    %v220 = vld [vmem:[#allocation5 + $0x3c0] sm:$0xff]
    %v221 = vld [vmem:[#allocation5 + $0x3c8] sm:$0xff]
    %v222 = vld [vmem:[#allocation5 + $0x3d0] sm:$0xff]
    %v223 = vld [vmem:[#allocation5 + $0x3d8] sm:$0xff]
    %v224 = vld [vmem:[#allocation5 + $0x3e0] sm:$0xff]
    %v225 = vld [vmem:[#allocation5 + $0x3e8] sm:$0xff]
    %v226 = vld [vmem:[#allocation5 + $0x3f0] sm:$0xff]
    %v227 = vld [vmem:[#allocation5 + $0x3f8] sm:$0xff]
    %v229 = vperm.slane %v95, 0
    %v230 = vperm.slane %v95, 1
    %234 = vst [vmem:[#allocation1] ss:$9 sm:$0xff] %v99
    %v235 = vld [vmem:[#allocation1] sm:$0xff]
    %v236 = vld [vmem:[#allocation1 + $0x9] sm:$0xff]
    %v237 = vld [vmem:[#allocation1 + $0x12] sm:$0xff]
    %v238 = vld [vmem:[#allocation1 + $0x1b] sm:$0xff]
    %v239 = vld [vmem:[#allocation1 + $0x24] sm:$0xff]
    %v240 = vld [vmem:[#allocation1 + $0x2d] sm:$0xff]
    %v241 = vld [vmem:[#allocation1 + $0x36] sm:$0xff]
    %v242 = vld [vmem:[#allocation1 + $0x3f] sm:$0xff]
    %v379 = vunpack.c.l.b16 %v100
    %v380 = vunpack.c.h.b16 %v100
    %v381 = vunpack.c.l.b16 %v101
    %v382 = vunpack.c.h.b16 %v101
    %v383 = vunpack.c.l.b16 %v102
    %v384 = vunpack.c.h.b16 %v102
    %v385 = vunpack.c.l.b16 %v103
    %v386 = vunpack.c.h.b16 %v103
    %v387 = vunpack.c.l.b16 %v104
    %v388 = vunpack.c.h.b16 %v104
    %v389 = vunpack.c.l.b16 %v105
    %v390 = vunpack.c.h.b16 %v105
    %v391 = vunpack.c.l.b16 %v106
    %v392 = vunpack.c.h.b16 %v106
    %v393 = vunpack.c.l.b16 %v107
    %v394 = vunpack.c.h.b16 %v107
    %v395 = vunpack.c.l.b16 %v108
    %v396 = vunpack.c.h.b16 %v108
    %v397 = vunpack.c.l.b16 %v109
    %v398 = vunpack.c.h.b16 %v109
    %v399 = vunpack.c.l.b16 %v110
    %v400 = vunpack.c.h.b16 %v110
    %v401 = vunpack.c.l.b16 %v111
    %v402 = vunpack.c.h.b16 %v111
    %v403 = vunpack.c.l.b16 %v112
    %v404 = vunpack.c.h.b16 %v112
    %v405 = vunpack.c.l.b16 %v113
    %v406 = vunpack.c.h.b16 %v113
    %v407 = vunpack.c.l.b16 %v114
    %v408 = vunpack.c.h.b16 %v114
    %v409 = vunpack.c.l.b16 %v115
    %v410 = vunpack.c.h.b16 %v115
    %v411 = vunpack.c.l.b16 %v116
    %v412 = vunpack.c.h.b16 %v116
    %v413 = vunpack.c.l.b16 %v117
    %v414 = vunpack.c.h.b16 %v117
    %v415 = vunpack.c.l.b16 %v118
    %v416 = vunpack.c.h.b16 %v118
    %v417 = vunpack.c.l.b16 %v119
    %v418 = vunpack.c.h.b16 %v119
    %v419 = vunpack.c.l.b16 %v120
    %v420 = vunpack.c.h.b16 %v120
    %v421 = vunpack.c.l.b16 %v121
    %v422 = vunpack.c.h.b16 %v121
    %v423 = vunpack.c.l.b16 %v122
    %v424 = vunpack.c.h.b16 %v122
    %v425 = vunpack.c.l.b16 %v123
    %v426 = vunpack.c.h.b16 %v123
    %v427 = vunpack.c.l.b16 %v124
    %v428 = vunpack.c.h.b16 %v124
    %v429 = vunpack.c.l.b16 %v125
    %v430 = vunpack.c.h.b16 %v125
    %v431 = vunpack.c.l.b16 %v126
    %v432 = vunpack.c.h.b16 %v126
    %v433 = vunpack.c.l.b16 %v127
    %v434 = vunpack.c.h.b16 %v127
    %v435 = vunpack.c.l.b16 %v128
    %v436 = vunpack.c.h.b16 %v128
    %v437 = vunpack.c.l.b16 %v129
    %v438 = vunpack.c.h.b16 %v129
    %v439 = vunpack.c.l.b16 %v130
    %v440 = vunpack.c.h.b16 %v130
    %v441 = vunpack.c.l.b16 %v131
    %v442 = vunpack.c.h.b16 %v131
    %v443 = vunpack.c.l.b16 %v132
    %v444 = vunpack.c.h.b16 %v132
    %v445 = vunpack.c.l.b16 %v133
    %v446 = vunpack.c.h.b16 %v133
    %v447 = vunpack.c.l.b16 %v134
    %v448 = vunpack.c.h.b16 %v134
    %v449 = vunpack.c.l.b16 %v135
    %v450 = vunpack.c.h.b16 %v135
    %v451 = vunpack.c.l.b16 %v136
    %v452 = vunpack.c.h.b16 %v136
    %v453 = vunpack.c.l.b16 %v137
    %v454 = vunpack.c.h.b16 %v137
    %v455 = vunpack.c.l.b16 %v138
    %v456 = vunpack.c.h.b16 %v138
    %v457 = vunpack.c.l.b16 %v139
    %v458 = vunpack.c.h.b16 %v139
    %v459 = vunpack.c.l.b16 %v140
    %v460 = vunpack.c.h.b16 %v140
    %v461 = vunpack.c.l.b16 %v141
    %v462 = vunpack.c.h.b16 %v141
    %v463 = vunpack.c.l.b16 %v142
    %v464 = vunpack.c.h.b16 %v142
    %v465 = vunpack.c.l.b16 %v143
    %v466 = vunpack.c.h.b16 %v143
    %v467 = vunpack.c.l.b16 %v144
    %v468 = vunpack.c.h.b16 %v144
    %v469 = vunpack.c.l.b16 %v145
    %v470 = vunpack.c.h.b16 %v145
    %v471 = vunpack.c.l.b16 %v146
    %v472 = vunpack.c.h.b16 %v146
    %v473 = vunpack.c.l.b16 %v147
    %v474 = vunpack.c.h.b16 %v147
    %v475 = vunpack.c.l.b16 %v148
    %v476 = vunpack.c.h.b16 %v148
    %v477 = vunpack.c.l.b16 %v149
    %v478 = vunpack.c.h.b16 %v149
    %v479 = vunpack.c.l.b16 %v150
    %v480 = vunpack.c.h.b16 %v150
    %v481 = vunpack.c.l.b16 %v151
    %v482 = vunpack.c.h.b16 %v151
    %v483 = vunpack.c.l.b16 %v152
    %v484 = vunpack.c.h.b16 %v152
    %v485 = vunpack.c.l.b16 %v153
    %v486 = vunpack.c.h.b16 %v153
    %v487 = vunpack.c.l.b16 %v154
    %v488 = vunpack.c.h.b16 %v154
    %v489 = vunpack.c.l.b16 %v155
    %v490 = vunpack.c.h.b16 %v155
    %v491 = vunpack.c.l.b16 %v156
    %v492 = vunpack.c.h.b16 %v156
    %v493 = vunpack.c.l.b16 %v157
    %v494 = vunpack.c.h.b16 %v157
    %v495 = vunpack.c.l.b16 %v158
    %v496 = vunpack.c.h.b16 %v158
    %v497 = vunpack.c.l.b16 %v159
    %v498 = vunpack.c.h.b16 %v159
    %v499 = vunpack.c.l.b16 %v160
    %v500 = vunpack.c.h.b16 %v160
    %v501 = vunpack.c.l.b16 %v161
    %v502 = vunpack.c.h.b16 %v161
    %v503 = vunpack.c.l.b16 %v162
    %v504 = vunpack.c.h.b16 %v162
    %v505 = vunpack.c.l.b16 %v163
    %v506 = vunpack.c.h.b16 %v163
    %v507 = vunpack.c.l.b16 %v164
    %v508 = vunpack.c.h.b16 %v164
    %v509 = vunpack.c.l.b16 %v165
    %v510 = vunpack.c.h.b16 %v165
    %v511 = vunpack.c.l.b16 %v166
    %v512 = vunpack.c.h.b16 %v166
    %v513 = vunpack.c.l.b16 %v167
    %v514 = vunpack.c.h.b16 %v167
    %v515 = vunpack.c.l.b16 %v168
    %v516 = vunpack.c.h.b16 %v168
    %v517 = vunpack.c.l.b16 %v169
    %v518 = vunpack.c.h.b16 %v169
    %v519 = vunpack.c.l.b16 %v170
    %v520 = vunpack.c.h.b16 %v170
    %v521 = vunpack.c.l.b16 %v171
    %v522 = vunpack.c.h.b16 %v171
    %v523 = vunpack.c.l.b16 %v172
    %v524 = vunpack.c.h.b16 %v172
    %v525 = vunpack.c.l.b16 %v173
    %v526 = vunpack.c.h.b16 %v173
    %v527 = vunpack.c.l.b16 %v174
    %v528 = vunpack.c.h.b16 %v174
    %v529 = vunpack.c.l.b16 %v175
    %v530 = vunpack.c.h.b16 %v175
    %v531 = vunpack.c.l.b16 %v176
    %v532 = vunpack.c.h.b16 %v176
    %v533 = vunpack.c.l.b16 %v177
    %v534 = vunpack.c.h.b16 %v177
    %v535 = vunpack.c.l.b16 %v178
    %v536 = vunpack.c.h.b16 %v178
    %v537 = vunpack.c.l.b16 %v179
    %v538 = vunpack.c.h.b16 %v179
    %v539 = vunpack.c.l.b16 %v180
    %v540 = vunpack.c.h.b16 %v180
    %v541 = vunpack.c.l.b16 %v181
    %v542 = vunpack.c.h.b16 %v181
    %v543 = vunpack.c.l.b16 %v182
    %v544 = vunpack.c.h.b16 %v182
    %v545 = vunpack.c.l.b16 %v183
    %v546 = vunpack.c.h.b16 %v183
    %v547 = vunpack.c.l.b16 %v184
    %v548 = vunpack.c.h.b16 %v184
    %v549 = vunpack.c.l.b16 %v185
    %v550 = vunpack.c.h.b16 %v185
    %v551 = vunpack.c.l.b16 %v186
    %v552 = vunpack.c.h.b16 %v186
    %v553 = vunpack.c.l.b16 %v187
    %v554 = vunpack.c.h.b16 %v187
    %v555 = vunpack.c.l.b16 %v188
    %v556 = vunpack.c.h.b16 %v188
    %v557 = vunpack.c.l.b16 %v189
    %v558 = vunpack.c.h.b16 %v189
    %v559 = vunpack.c.l.b16 %v190
    %v560 = vunpack.c.h.b16 %v190
    %v561 = vunpack.c.l.b16 %v191
    %v562 = vunpack.c.h.b16 %v191
    %v563 = vunpack.c.l.b16 %v192
    %v564 = vunpack.c.h.b16 %v192
    %v565 = vunpack.c.l.b16 %v193
    %v566 = vunpack.c.h.b16 %v193
    %v567 = vunpack.c.l.b16 %v194
    %v568 = vunpack.c.h.b16 %v194
    %v569 = vunpack.c.l.b16 %v195
    %v570 = vunpack.c.h.b16 %v195
    %v571 = vunpack.c.l.b16 %v196
    %v572 = vunpack.c.h.b16 %v196
    %v573 = vunpack.c.l.b16 %v197
    %v574 = vunpack.c.h.b16 %v197
    %v575 = vunpack.c.l.b16 %v198
    %v576 = vunpack.c.h.b16 %v198
    %v577 = vunpack.c.l.b16 %v199
    %v578 = vunpack.c.h.b16 %v199
    %v579 = vunpack.c.l.b16 %v200
    %v580 = vunpack.c.h.b16 %v200
    %v581 = vunpack.c.l.b16 %v201
    %v582 = vunpack.c.h.b16 %v201
    %v583 = vunpack.c.l.b16 %v202
    %v584 = vunpack.c.h.b16 %v202
    %v585 = vunpack.c.l.b16 %v203
    %v586 = vunpack.c.h.b16 %v203
    %v587 = vunpack.c.l.b16 %v204
    %v588 = vunpack.c.h.b16 %v204
    %v589 = vunpack.c.l.b16 %v205
    %v590 = vunpack.c.h.b16 %v205
    %v591 = vunpack.c.l.b16 %v206
    %v592 = vunpack.c.h.b16 %v206
    %v593 = vunpack.c.l.b16 %v207
    %v594 = vunpack.c.h.b16 %v207
    %v595 = vunpack.c.l.b16 %v208
    %v596 = vunpack.c.h.b16 %v208
    %v597 = vunpack.c.l.b16 %v209
    %v598 = vunpack.c.h.b16 %v209
    %v599 = vunpack.c.l.b16 %v210
    %v600 = vunpack.c.h.b16 %v210
    %v601 = vunpack.c.l.b16 %v211
    %v602 = vunpack.c.h.b16 %v211
    %v603 = vunpack.c.l.b16 %v212
    %v604 = vunpack.c.h.b16 %v212
    %v605 = vunpack.c.l.b16 %v213
    %v606 = vunpack.c.h.b16 %v213
    %v607 = vunpack.c.l.b16 %v214
    %v608 = vunpack.c.h.b16 %v214
    %v609 = vunpack.c.l.b16 %v215
    %v610 = vunpack.c.h.b16 %v215
    %v611 = vunpack.c.l.b16 %v216
    %v612 = vunpack.c.h.b16 %v216
    %v613 = vunpack.c.l.b16 %v217
    %v614 = vunpack.c.h.b16 %v217
    %v615 = vunpack.c.l.b16 %v218
    %v616 = vunpack.c.h.b16 %v218
    %v617 = vunpack.c.l.b16 %v219
    %v618 = vunpack.c.h.b16 %v219
    %v619 = vunpack.c.l.b16 %v220
    %v620 = vunpack.c.h.b16 %v220
    %v621 = vunpack.c.l.b16 %v221
    %v622 = vunpack.c.h.b16 %v221
    %v623 = vunpack.c.l.b16 %v222
    %v624 = vunpack.c.h.b16 %v222
    %v625 = vunpack.c.l.b16 %v223
    %v626 = vunpack.c.h.b16 %v223
    %v627 = vunpack.c.l.b16 %v224
    %v628 = vunpack.c.h.b16 %v224
    %v629 = vunpack.c.l.b16 %v225
    %v630 = vunpack.c.h.b16 %v225
    %v631 = vunpack.c.l.b16 %v226
    %v632 = vunpack.c.h.b16 %v226
    %v633 = vunpack.c.l.b16 %v227
    %v634 = vunpack.c.h.b16 %v227
    %v635 = vpack.c.b16 %v381, %v379
    %v636 = vpack.c.b16 %v382, %v380
    %v637 = vpack.c.b16 %v385, %v383
    %v638 = vpack.c.b16 %v386, %v384
    %v639 = vpack.c.b16 %v389, %v387
    %v640 = vpack.c.b16 %v390, %v388
    %v641 = vpack.c.b16 %v393, %v391
    %v642 = vpack.c.b16 %v394, %v392
    %v643 = vpack.c.b16 %v397, %v395
    %v644 = vpack.c.b16 %v398, %v396
    %v645 = vpack.c.b16 %v401, %v399
    %v646 = vpack.c.b16 %v402, %v400
    %v647 = vpack.c.b16 %v405, %v403
    %v648 = vpack.c.b16 %v406, %v404
    %v649 = vpack.c.b16 %v409, %v407
    %v650 = vpack.c.b16 %v410, %v408
    %v651 = vpack.c.b16 %v413, %v411
    %v652 = vpack.c.b16 %v414, %v412
    %v653 = vpack.c.b16 %v417, %v415
    %v654 = vpack.c.b16 %v418, %v416
    %v655 = vpack.c.b16 %v421, %v419
    %v656 = vpack.c.b16 %v422, %v420
    %v657 = vpack.c.b16 %v425, %v423
    %v658 = vpack.c.b16 %v426, %v424
    %v659 = vpack.c.b16 %v429, %v427
    %v660 = vpack.c.b16 %v430, %v428
    %v661 = vpack.c.b16 %v433, %v431
    %v662 = vpack.c.b16 %v434, %v432
    %v663 = vpack.c.b16 %v437, %v435
    %v664 = vpack.c.b16 %v438, %v436
    %v665 = vpack.c.b16 %v441, %v439
    %v666 = vpack.c.b16 %v442, %v440
    %v667 = vpack.c.b16 %v445, %v443
    %v668 = vpack.c.b16 %v446, %v444
    %v669 = vpack.c.b16 %v449, %v447
    %v670 = vpack.c.b16 %v450, %v448
    %v671 = vpack.c.b16 %v453, %v451
    %v672 = vpack.c.b16 %v454, %v452
    %v673 = vpack.c.b16 %v457, %v455
    %v674 = vpack.c.b16 %v458, %v456
    %v675 = vpack.c.b16 %v461, %v459
    %v676 = vpack.c.b16 %v462, %v460
    %v677 = vpack.c.b16 %v465, %v463
    %v678 = vpack.c.b16 %v466, %v464
    %v679 = vpack.c.b16 %v469, %v467
    %v680 = vpack.c.b16 %v470, %v468
    %v681 = vpack.c.b16 %v473, %v471
    %v682 = vpack.c.b16 %v474, %v472
    %v683 = vpack.c.b16 %v477, %v475
    %v684 = vpack.c.b16 %v478, %v476
    %v685 = vpack.c.b16 %v481, %v479
    %v686 = vpack.c.b16 %v482, %v480
    %v687 = vpack.c.b16 %v485, %v483
    %v688 = vpack.c.b16 %v486, %v484
    %v689 = vpack.c.b16 %v489, %v487
    %v690 = vpack.c.b16 %v490, %v488
    %v691 = vpack.c.b16 %v493, %v491
    %v692 = vpack.c.b16 %v494, %v492
    %v693 = vpack.c.b16 %v497, %v495
    %v694 = vpack.c.b16 %v498, %v496
    %v695 = vpack.c.b16 %v501, %v499
    %v696 = vpack.c.b16 %v502, %v500
    %v697 = vpack.c.b16 %v505, %v503
    %v698 = vpack.c.b16 %v506, %v504
    %v699 = vpack.c.b16 %v509, %v507
    %v700 = vpack.c.b16 %v510, %v508
    %v701 = vpack.c.b16 %v513, %v511
    %v702 = vpack.c.b16 %v514, %v512
    %v703 = vpack.c.b16 %v517, %v515
    %v704 = vpack.c.b16 %v518, %v516
    %v705 = vpack.c.b16 %v521, %v519
    %v706 = vpack.c.b16 %v522, %v520
    %v707 = vpack.c.b16 %v525, %v523
    %v708 = vpack.c.b16 %v526, %v524
    %v709 = vpack.c.b16 %v529, %v527
    %v710 = vpack.c.b16 %v530, %v528
    %v711 = vpack.c.b16 %v533, %v531
    %v712 = vpack.c.b16 %v534, %v532
    %v713 = vpack.c.b16 %v537, %v535
    %v714 = vpack.c.b16 %v538, %v536
    %v715 = vpack.c.b16 %v541, %v539
    %v716 = vpack.c.b16 %v542, %v540
    %v717 = vpack.c.b16 %v545, %v543
    %v718 = vpack.c.b16 %v546, %v544
    %v719 = vpack.c.b16 %v549, %v547
    %v720 = vpack.c.b16 %v550, %v548
    %v721 = vpack.c.b16 %v553, %v551
    %v722 = vpack.c.b16 %v554, %v552
    %v723 = vpack.c.b16 %v557, %v555
    %v724 = vpack.c.b16 %v558, %v556
    %v725 = vpack.c.b16 %v561, %v559
    %v726 = vpack.c.b16 %v562, %v560
    %v727 = vpack.c.b16 %v565, %v563
    %v728 = vpack.c.b16 %v566, %v564
    %v729 = vpack.c.b16 %v569, %v567
    %v730 = vpack.c.b16 %v570, %v568
    %v731 = vpack.c.b16 %v573, %v571
    %v732 = vpack.c.b16 %v574, %v572
    %v733 = vpack.c.b16 %v577, %v575
    %v734 = vpack.c.b16 %v578, %v576
    %v735 = vpack.c.b16 %v581, %v579
    %v736 = vpack.c.b16 %v582, %v580
    %v737 = vpack.c.b16 %v585, %v583
    %v738 = vpack.c.b16 %v586, %v584
    %v739 = vpack.c.b16 %v589, %v587
    %v740 = vpack.c.b16 %v590, %v588
    %v741 = vpack.c.b16 %v593, %v591
    %v742 = vpack.c.b16 %v594, %v592
    %v743 = vpack.c.b16 %v597, %v595
    %v744 = vpack.c.b16 %v598, %v596
    %v745 = vpack.c.b16 %v601, %v599
    %v746 = vpack.c.b16 %v602, %v600
    %v747 = vpack.c.b16 %v605, %v603
    %v748 = vpack.c.b16 %v606, %v604
    %v749 = vpack.c.b16 %v609, %v607
    %v750 = vpack.c.b16 %v610, %v608
    %v751 = vpack.c.b16 %v613, %v611
    %v752 = vpack.c.b16 %v614, %v612
    %v753 = vpack.c.b16 %v617, %v615
    %v754 = vpack.c.b16 %v618, %v616
    %v755 = vpack.c.b16 %v621, %v619
    %v756 = vpack.c.b16 %v622, %v620
    %v757 = vpack.c.b16 %v625, %v623
    %v758 = vpack.c.b16 %v626, %v624
    %v759 = vpack.c.b16 %v629, %v627
    %v760 = vpack.c.b16 %v630, %v628
    %v761 = vpack.c.b16 %v633, %v631
    %v762 = vpack.c.b16 %v634, %v632
    %891 = vmatpush.bf16.msra.mxu0 %v649
    %892 = vmatpush.bf16.msra.mxu0 %v647
    %893 = vmatpush.bf16.msra.mxu0 %v645
    %894 = vmatpush.bf16.msra.mxu0 %v643
    %895 = vmatpush.bf16.msra.mxu0 %v641
    %896 = vmatpush.bf16.msra.mxu0 %v639
    %897 = vmatpush.bf16.msra.mxu0 %v637
    %898 = vmatpush.bf16.msra.mxu0 %v635
    %899 = vmatmul.bf16.gmra.mxu0 %v235
    %v900 = vpop.f32.mrf.mxu0
    %v901 = vadd.f32 %v229, %v900
    %v902 = vpop.f32.mrf.mxu0
    %903 = vdwg.mxu0
    %904 = vmatpush.bf16.msra.mxu0 %v665
    %905 = vmatpush.bf16.msra.mxu0 %v663
    %906 = vmatpush.bf16.msra.mxu0 %v661
    %907 = vmatpush.bf16.msra.mxu0 %v659
    %908 = vmatpush.bf16.msra.mxu0 %v657
    %909 = vmatpush.bf16.msra.mxu0 %v655
    %910 = vmatpush.bf16.msra.mxu0 %v653
    %911 = vmatpush.bf16.msra.mxu0 %v651
    %912 = vmatmul.bf16.gmra.mxu0 %v236
    %v913 = vpop.f32.mrf.mxu0
    %v914 = vadd.f32 %v901, %v913
    %v915 = vpop.f32.mrf.mxu0
    %916 = vdwg.mxu0
    %917 = vmatpush.bf16.msra.mxu0 %v681
    %918 = vmatpush.bf16.msra.mxu0 %v679
    %919 = vmatpush.bf16.msra.mxu0 %v677
    %920 = vmatpush.bf16.msra.mxu0 %v675
    %921 = vmatpush.bf16.msra.mxu0 %v673
    %922 = vmatpush.bf16.msra.mxu0 %v671
    %923 = vmatpush.bf16.msra.mxu0 %v669
    %924 = vmatpush.bf16.msra.mxu0 %v667
    %925 = vmatmul.bf16.gmra.mxu0 %v237
    %v926 = vpop.f32.mrf.mxu0
    %v927 = vadd.f32 %v914, %v926
    %v928 = vpop.f32.mrf.mxu0
    %929 = vdwg.mxu0
    %930 = vmatpush.bf16.msra.mxu0 %v697
    %931 = vmatpush.bf16.msra.mxu0 %v695
    %932 = vmatpush.bf16.msra.mxu0 %v693
    %933 = vmatpush.bf16.msra.mxu0 %v691
    %934 = vmatpush.bf16.msra.mxu0 %v689
    %935 = vmatpush.bf16.msra.mxu0 %v687
    %936 = vmatpush.bf16.msra.mxu0 %v685
    %937 = vmatpush.bf16.msra.mxu0 %v683
    %938 = vmatmul.bf16.gmra.mxu0 %v238
    %v939 = vpop.f32.mrf.mxu0
    %v940 = vadd.f32 %v927, %v939
    %v941 = vpop.f32.mrf.mxu0
    %942 = vdwg.mxu0
    %943 = vmatpush.bf16.msra.mxu0 %v713
    %944 = vmatpush.bf16.msra.mxu0 %v711
    %945 = vmatpush.bf16.msra.mxu0 %v709
    %946 = vmatpush.bf16.msra.mxu0 %v707
    %947 = vmatpush.bf16.msra.mxu0 %v705
    %948 = vmatpush.bf16.msra.mxu0 %v703
    %949 = vmatpush.bf16.msra.mxu0 %v701
    %950 = vmatpush.bf16.msra.mxu0 %v699
    %951 = vmatmul.bf16.gmra.mxu0 %v239
    %v952 = vpop.f32.mrf.mxu0
    %v953 = vadd.f32 %v940, %v952
    %v954 = vpop.f32.mrf.mxu0
    %955 = vdwg.mxu0
    %956 = vmatpush.bf16.msra.mxu0 %v729
    %957 = vmatpush.bf16.msra.mxu0 %v727
    %958 = vmatpush.bf16.msra.mxu0 %v725
    %959 = vmatpush.bf16.msra.mxu0 %v723
    %960 = vmatpush.bf16.msra.mxu0 %v721
    %961 = vmatpush.bf16.msra.mxu0 %v719
    %962 = vmatpush.bf16.msra.mxu0 %v717
    %963 = vmatpush.bf16.msra.mxu0 %v715
    %964 = vmatmul.bf16.gmra.mxu0 %v240
    %v965 = vpop.f32.mrf.mxu0
    %v966 = vadd.f32 %v953, %v965
    %v967 = vpop.f32.mrf.mxu0
    %968 = vdwg.mxu0
    %969 = vmatpush.bf16.msra.mxu0 %v745
    %970 = vmatpush.bf16.msra.mxu0 %v743
    %971 = vmatpush.bf16.msra.mxu0 %v741
    %972 = vmatpush.bf16.msra.mxu0 %v739
    %973 = vmatpush.bf16.msra.mxu0 %v737
    %974 = vmatpush.bf16.msra.mxu0 %v735
    %975 = vmatpush.bf16.msra.mxu0 %v733
    %976 = vmatpush.bf16.msra.mxu0 %v731
    %977 = vmatmul.bf16.gmra.mxu0 %v241
    %v978 = vpop.f32.mrf.mxu0
    %v979 = vadd.f32 %v966, %v978
    %v980 = vpop.f32.mrf.mxu0
    %981 = vdwg.mxu0
    %982 = vmatpush.bf16.msra.mxu0 %v761
    %983 = vmatpush.bf16.msra.mxu0 %v759
    %984 = vmatpush.bf16.msra.mxu0 %v757
    %985 = vmatpush.bf16.msra.mxu0 %v755
    %986 = vmatpush.bf16.msra.mxu0 %v753
    %987 = vmatpush.bf16.msra.mxu0 %v751
    %988 = vmatpush.bf16.msra.mxu0 %v749
    %989 = vmatpush.bf16.msra.mxu0 %v747
    %990 = vmatmul.bf16.gmra.mxu0 %v242
    %v991 = vpop.f32.mrf.mxu0
    %v992 = vadd.f32 %v979, %v991
    %v993 = vpop.f32.mrf.mxu0
    %994 = vdwg.mxu0
    %995 = vmatpush.bf16.msra.mxu0 %v650
    %996 = vmatpush.bf16.msra.mxu0 %v648
    %997 = vmatpush.bf16.msra.mxu0 %v646
    %998 = vmatpush.bf16.msra.mxu0 %v644
    %999 = vmatpush.bf16.msra.mxu0 %v642
    %1000 = vmatpush.bf16.msra.mxu0 %v640
    %1001 = vmatpush.bf16.msra.mxu0 %v638
    %1002 = vmatpush.bf16.msra.mxu0 %v636
    %1003 = vmatmul.bf16.gmra.mxu0 %v235
    %v1004 = vpop.f32.mrf.mxu0
    %v1005 = vadd.f32 %v230, %v1004
    %v1006 = vpop.f32.mrf.mxu0
    %1007 = vdwg.mxu0
    %1008 = vmatpush.bf16.msra.mxu0 %v666
    %1009 = vmatpush.bf16.msra.mxu0 %v664
    %1010 = vmatpush.bf16.msra.mxu0 %v662
    %1011 = vmatpush.bf16.msra.mxu0 %v660
    %1012 = vmatpush.bf16.msra.mxu0 %v658
    %1013 = vmatpush.bf16.msra.mxu0 %v656
    %1014 = vmatpush.bf16.msra.mxu0 %v654
    %1015 = vmatpush.bf16.msra.mxu0 %v652
    %1016 = vmatmul.bf16.gmra.mxu0 %v236
    %v1017 = vpop.f32.mrf.mxu0
    %v1018 = vadd.f32 %v1005, %v1017
    %v1019 = vpop.f32.mrf.mxu0
    %1020 = vdwg.mxu0
    %1021 = vmatpush.bf16.msra.mxu0 %v682
    %1022 = vmatpush.bf16.msra.mxu0 %v680
    %1023 = vmatpush.bf16.msra.mxu0 %v678
    %1024 = vmatpush.bf16.msra.mxu0 %v676
    %1025 = vmatpush.bf16.msra.mxu0 %v674
    %1026 = vmatpush.bf16.msra.mxu0 %v672
    %1027 = vmatpush.bf16.msra.mxu0 %v670
    %1028 = vmatpush.bf16.msra.mxu0 %v668
    %1029 = vmatmul.bf16.gmra.mxu0 %v237
    %v1030 = vpop.f32.mrf.mxu0
    %v1031 = vadd.f32 %v1018, %v1030
    %v1032 = vpop.f32.mrf.mxu0
    %1033 = vdwg.mxu0
    %1034 = vmatpush.bf16.msra.mxu0 %v698
    %1035 = vmatpush.bf16.msra.mxu0 %v696
    %1036 = vmatpush.bf16.msra.mxu0 %v694
    %1037 = vmatpush.bf16.msra.mxu0 %v692
    %1038 = vmatpush.bf16.msra.mxu0 %v690
    %1039 = vmatpush.bf16.msra.mxu0 %v688
    %1040 = vmatpush.bf16.msra.mxu0 %v686
    %1041 = vmatpush.bf16.msra.mxu0 %v684
    %1042 = vmatmul.bf16.gmra.mxu0 %v238
    %v1043 = vpop.f32.mrf.mxu0
    %v1044 = vadd.f32 %v1031, %v1043
    %v1045 = vpop.f32.mrf.mxu0
    %1046 = vdwg.mxu0
    %1047 = vmatpush.bf16.msra.mxu0 %v714
    %1048 = vmatpush.bf16.msra.mxu0 %v712
    %1049 = vmatpush.bf16.msra.mxu0 %v710
    %1050 = vmatpush.bf16.msra.mxu0 %v708
    %1051 = vmatpush.bf16.msra.mxu0 %v706
    %1052 = vmatpush.bf16.msra.mxu0 %v704
    %1053 = vmatpush.bf16.msra.mxu0 %v702
    %1054 = vmatpush.bf16.msra.mxu0 %v700
    %1055 = vmatmul.bf16.gmra.mxu0 %v239
    %v1056 = vpop.f32.mrf.mxu0
    %v1057 = vadd.f32 %v1044, %v1056
    %v1058 = vpop.f32.mrf.mxu0
    %1059 = vdwg.mxu0
    %1060 = vmatpush.bf16.msra.mxu0 %v730
    %1061 = vmatpush.bf16.msra.mxu0 %v728
    %1062 = vmatpush.bf16.msra.mxu0 %v726
    %1063 = vmatpush.bf16.msra.mxu0 %v724
    %1064 = vmatpush.bf16.msra.mxu0 %v722
    %1065 = vmatpush.bf16.msra.mxu0 %v720
    %1066 = vmatpush.bf16.msra.mxu0 %v718
    %1067 = vmatpush.bf16.msra.mxu0 %v716
    %1068 = vmatmul.bf16.gmra.mxu0 %v240
    %v1069 = vpop.f32.mrf.mxu0
    %v1070 = vadd.f32 %v1057, %v1069
    %v1071 = vpop.f32.mrf.mxu0
    %1072 = vdwg.mxu0
    %1073 = vmatpush.bf16.msra.mxu0 %v746
    %1074 = vmatpush.bf16.msra.mxu0 %v744
    %1075 = vmatpush.bf16.msra.mxu0 %v742
    %1076 = vmatpush.bf16.msra.mxu0 %v740
    %1077 = vmatpush.bf16.msra.mxu0 %v738
    %1078 = vmatpush.bf16.msra.mxu0 %v736
    %1079 = vmatpush.bf16.msra.mxu0 %v734
    %1080 = vmatpush.bf16.msra.mxu0 %v732
    %1081 = vmatmul.bf16.gmra.mxu0 %v241
    %v1082 = vpop.f32.mrf.mxu0
    %v1083 = vadd.f32 %v1070, %v1082
    %v1084 = vpop.f32.mrf.mxu0
    %1085 = vdwg.mxu0
    %1086 = vmatpush.bf16.msra.mxu0 %v762
    %1087 = vmatpush.bf16.msra.mxu0 %v760
    %1088 = vmatpush.bf16.msra.mxu0 %v758
    %1089 = vmatpush.bf16.msra.mxu0 %v756
    %1090 = vmatpush.bf16.msra.mxu0 %v754
    %1091 = vmatpush.bf16.msra.mxu0 %v752
    %1092 = vmatpush.bf16.msra.mxu0 %v750
    %1093 = vmatpush.bf16.msra.mxu0 %v748
    %1094 = vmatmul.bf16.gmra.mxu0 %v242
    %v1095 = vpop.f32.mrf.mxu0
    %v1096 = vadd.f32 %v1083, %v1095
    %v1097 = vpop.f32.mrf.mxu0
    %1098 = vdwg.mxu0
    %v1099 = vmax.f32 %v992, 0.0
    %v1100 = vmax.f32 %v1096, 0.0
    %v1101 = vpack.c.bf16 %v1099, %v1099
    %v1102 = vpack.c.bf16 %v1100, %v1100
    %v1103 = vld [vmem:[#allocation7] sm:$0xff]
    %v1104 = vld [vmem:[#allocation7 + $0x8] sm:$0xff]
    %v1105 = vld [vmem:[#allocation7 + $0x10] sm:$0xff]
    %v1106 = vld [vmem:[#allocation7 + $0x18] sm:$0xff]
    %v1107 = vld [vmem:[#allocation7 + $0x20] sm:$0xff]
    %v1108 = vld [vmem:[#allocation7 + $0x28] sm:$0xff]
    %v1109 = vld [vmem:[#allocation7 + $0x30] sm:$0xff]
    %v1110 = vld [vmem:[#allocation7 + $0x38] sm:$0xff]
    %v1111 = vld [vmem:[#allocation7 + $0x40] sm:$0xff]
    %v1112 = vld [vmem:[#allocation7 + $0x48] sm:$0xff]
    %v1113 = vld [vmem:[#allocation7 + $0x50] sm:$0xff]
    %v1114 = vld [vmem:[#allocation7 + $0x58] sm:$0xff]
    %v1115 = vld [vmem:[#allocation7 + $0x60] sm:$0xff]
    %v1116 = vld [vmem:[#allocation7 + $0x68] sm:$0xff]
    %v1117 = vld [vmem:[#allocation7 + $0x70] sm:$0xff]
    %v1118 = vld [vmem:[#allocation7 + $0x78] sm:$0xff]
    %v1119 = vld [vmem:[#allocation7 + $0x80] sm:$0xff]
    %v1120 = vld [vmem:[#allocation7 + $0x88] sm:$0xff]
    %v1121 = vld [vmem:[#allocation7 + $0x90] sm:$0xff]
    %v1122 = vld [vmem:[#allocation7 + $0x98] sm:$0xff]
    %v1123 = vld [vmem:[#allocation7 + $0xa0] sm:$0xff]
    %v1124 = vld [vmem:[#allocation7 + $0xa8] sm:$0xff]
    %v1125 = vld [vmem:[#allocation7 + $0xb0] sm:$0xff]
    %v1126 = vld [vmem:[#allocation7 + $0xb8] sm:$0xff]
    %v1127 = vld [vmem:[#allocation7 + $0xc0] sm:$0xff]
    %v1128 = vld [vmem:[#allocation7 + $0xc8] sm:$0xff]
    %v1129 = vld [vmem:[#allocation7 + $0xd0] sm:$0xff]
    %v1130 = vld [vmem:[#allocation7 + $0xd8] sm:$0xff]
    %v1131 = vld [vmem:[#allocation7 + $0xe0] sm:$0xff]
    %v1132 = vld [vmem:[#allocation7 + $0xe8] sm:$0xff]
    %v1133 = vld [vmem:[#allocation7 + $0xf0] sm:$0xff]
    %v1134 = vld [vmem:[#allocation7 + $0xf8] sm:$0xff]
    %v1135 = vld [vmem:[#allocation7 + $0x100] sm:$0xff]
    %v1136 = vld [vmem:[#allocation7 + $0x108] sm:$0xff]
    %v1137 = vld [vmem:[#allocation7 + $0x110] sm:$0xff]
    %v1138 = vld [vmem:[#allocation7 + $0x118] sm:$0xff]
    %v1139 = vld [vmem:[#allocation7 + $0x120] sm:$0xff]
    %v1140 = vld [vmem:[#allocation7 + $0x128] sm:$0xff]
    %v1141 = vld [vmem:[#allocation7 + $0x130] sm:$0xff]
    %v1142 = vld [vmem:[#allocation7 + $0x138] sm:$0xff]
    %v1143 = vld [vmem:[#allocation7 + $0x140] sm:$0xff]
    %v1144 = vld [vmem:[#allocation7 + $0x148] sm:$0xff]
    %v1145 = vld [vmem:[#allocation7 + $0x150] sm:$0xff]
    %v1146 = vld [vmem:[#allocation7 + $0x158] sm:$0xff]
    %v1147 = vld [vmem:[#allocation7 + $0x160] sm:$0xff]
    %v1148 = vld [vmem:[#allocation7 + $0x168] sm:$0xff]
    %v1149 = vld [vmem:[#allocation7 + $0x170] sm:$0xff]
    %v1150 = vld [vmem:[#allocation7 + $0x178] sm:$0xff]
    %v1151 = vld [vmem:[#allocation7 + $0x180] sm:$0xff]
    %v1152 = vld [vmem:[#allocation7 + $0x188] sm:$0xff]
    %v1153 = vld [vmem:[#allocation7 + $0x190] sm:$0xff]
    %v1154 = vld [vmem:[#allocation7 + $0x198] sm:$0xff]
    %v1155 = vld [vmem:[#allocation7 + $0x1a0] sm:$0xff]
    %v1156 = vld [vmem:[#allocation7 + $0x1a8] sm:$0xff]
    %v1157 = vld [vmem:[#allocation7 + $0x1b0] sm:$0xff]
    %v1158 = vld [vmem:[#allocation7 + $0x1b8] sm:$0xff]
    %v1159 = vld [vmem:[#allocation7 + $0x1c0] sm:$0xff]
    %v1160 = vld [vmem:[#allocation7 + $0x1c8] sm:$0xff]
    %v1161 = vld [vmem:[#allocation7 + $0x1d0] sm:$0xff]
    %v1162 = vld [vmem:[#allocation7 + $0x1d8] sm:$0xff]
    %v1163 = vld [vmem:[#allocation7 + $0x1e0] sm:$0xff]
    %v1164 = vld [vmem:[#allocation7 + $0x1e8] sm:$0xff]
    %v1165 = vld [vmem:[#allocation7 + $0x1f0] sm:$0xff]
    %v1166 = vld [vmem:[#allocation7 + $0x1f8] sm:$0xff]
    %v1231 = vunpack.c.l.b16 %v1103
    %v1232 = vunpack.c.h.b16 %v1103
    %v1233 = vunpack.c.l.b16 %v1104
    %v1234 = vunpack.c.h.b16 %v1104
    %v1235 = vunpack.c.l.b16 %v1105
    %v1236 = vunpack.c.h.b16 %v1105
    %v1237 = vunpack.c.l.b16 %v1106
    %v1238 = vunpack.c.h.b16 %v1106
    %v1239 = vunpack.c.l.b16 %v1107
    %v1240 = vunpack.c.h.b16 %v1107
    %v1241 = vunpack.c.l.b16 %v1108
    %v1242 = vunpack.c.h.b16 %v1108
    %v1243 = vunpack.c.l.b16 %v1109
    %v1244 = vunpack.c.h.b16 %v1109
    %v1245 = vunpack.c.l.b16 %v1110
    %v1246 = vunpack.c.h.b16 %v1110
    %v1247 = vunpack.c.l.b16 %v1111
    %v1248 = vunpack.c.h.b16 %v1111
    %v1249 = vunpack.c.l.b16 %v1112
    %v1250 = vunpack.c.h.b16 %v1112
    %v1251 = vunpack.c.l.b16 %v1113
    %v1252 = vunpack.c.h.b16 %v1113
    %v1253 = vunpack.c.l.b16 %v1114
    %v1254 = vunpack.c.h.b16 %v1114
    %v1255 = vunpack.c.l.b16 %v1115
    %v1256 = vunpack.c.h.b16 %v1115
    %v1257 = vunpack.c.l.b16 %v1116
    %v1258 = vunpack.c.h.b16 %v1116
    %v1259 = vunpack.c.l.b16 %v1117
    %v1260 = vunpack.c.h.b16 %v1117
    %v1261 = vunpack.c.l.b16 %v1118
    %v1262 = vunpack.c.h.b16 %v1118
    %v1263 = vunpack.c.l.b16 %v1119
    %v1264 = vunpack.c.h.b16 %v1119
    %v1265 = vunpack.c.l.b16 %v1120
    %v1266 = vunpack.c.h.b16 %v1120
    %v1267 = vunpack.c.l.b16 %v1121
    %v1268 = vunpack.c.h.b16 %v1121
    %v1269 = vunpack.c.l.b16 %v1122
    %v1270 = vunpack.c.h.b16 %v1122
    %v1271 = vunpack.c.l.b16 %v1123
    %v1272 = vunpack.c.h.b16 %v1123
    %v1273 = vunpack.c.l.b16 %v1124
    %v1274 = vunpack.c.h.b16 %v1124
    %v1275 = vunpack.c.l.b16 %v1125
    %v1276 = vunpack.c.h.b16 %v1125
    %v1277 = vunpack.c.l.b16 %v1126
    %v1278 = vunpack.c.h.b16 %v1126
    %v1279 = vunpack.c.l.b16 %v1127
    %v1280 = vunpack.c.h.b16 %v1127
    %v1281 = vunpack.c.l.b16 %v1128
    %v1282 = vunpack.c.h.b16 %v1128
    %v1283 = vunpack.c.l.b16 %v1129
    %v1284 = vunpack.c.h.b16 %v1129
    %v1285 = vunpack.c.l.b16 %v1130
    %v1286 = vunpack.c.h.b16 %v1130
    %v1287 = vunpack.c.l.b16 %v1131
    %v1288 = vunpack.c.h.b16 %v1131
    %v1289 = vunpack.c.l.b16 %v1132
    %v1290 = vunpack.c.h.b16 %v1132
    %v1291 = vunpack.c.l.b16 %v1133
    %v1292 = vunpack.c.h.b16 %v1133
    %v1293 = vunpack.c.l.b16 %v1134
    %v1294 = vunpack.c.h.b16 %v1134
    %v1295 = vunpack.c.l.b16 %v1135
    %v1296 = vunpack.c.h.b16 %v1135
    %v1297 = vunpack.c.l.b16 %v1136
    %v1298 = vunpack.c.h.b16 %v1136
    %v1299 = vunpack.c.l.b16 %v1137
    %v1300 = vunpack.c.h.b16 %v1137
    %v1301 = vunpack.c.l.b16 %v1138
    %v1302 = vunpack.c.h.b16 %v1138
    %v1303 = vunpack.c.l.b16 %v1139
    %v1304 = vunpack.c.h.b16 %v1139
    %v1305 = vunpack.c.l.b16 %v1140
    %v1306 = vunpack.c.h.b16 %v1140
    %v1307 = vunpack.c.l.b16 %v1141
    %v1308 = vunpack.c.h.b16 %v1141
    %v1309 = vunpack.c.l.b16 %v1142
    %v1310 = vunpack.c.h.b16 %v1142
    %v1311 = vunpack.c.l.b16 %v1143
    %v1312 = vunpack.c.h.b16 %v1143
    %v1313 = vunpack.c.l.b16 %v1144
    %v1314 = vunpack.c.h.b16 %v1144
    %v1315 = vunpack.c.l.b16 %v1145
    %v1316 = vunpack.c.h.b16 %v1145
    %v1317 = vunpack.c.l.b16 %v1146
    %v1318 = vunpack.c.h.b16 %v1146
    %v1319 = vunpack.c.l.b16 %v1147
    %v1320 = vunpack.c.h.b16 %v1147
    %v1321 = vunpack.c.l.b16 %v1148
    %v1322 = vunpack.c.h.b16 %v1148
    %v1323 = vunpack.c.l.b16 %v1149
    %v1324 = vunpack.c.h.b16 %v1149
    %v1325 = vunpack.c.l.b16 %v1150
    %v1326 = vunpack.c.h.b16 %v1150
    %v1327 = vunpack.c.l.b16 %v1151
    %v1328 = vunpack.c.h.b16 %v1151
    %v1329 = vunpack.c.l.b16 %v1152
    %v1330 = vunpack.c.h.b16 %v1152
    %v1331 = vunpack.c.l.b16 %v1153
    %v1332 = vunpack.c.h.b16 %v1153
    %v1333 = vunpack.c.l.b16 %v1154
    %v1334 = vunpack.c.h.b16 %v1154
    %v1335 = vunpack.c.l.b16 %v1155
    %v1336 = vunpack.c.h.b16 %v1155
    %v1337 = vunpack.c.l.b16 %v1156
    %v1338 = vunpack.c.h.b16 %v1156
    %v1339 = vunpack.c.l.b16 %v1157
    %v1340 = vunpack.c.h.b16 %v1157
    %v1341 = vunpack.c.l.b16 %v1158
    %v1342 = vunpack.c.h.b16 %v1158
    %v1343 = vunpack.c.l.b16 %v1159
    %v1344 = vunpack.c.h.b16 %v1159
    %v1345 = vunpack.c.l.b16 %v1160
    %v1346 = vunpack.c.h.b16 %v1160
    %v1347 = vunpack.c.l.b16 %v1161
    %v1348 = vunpack.c.h.b16 %v1161
    %v1349 = vunpack.c.l.b16 %v1162
    %v1350 = vunpack.c.h.b16 %v1162
    %v1351 = vunpack.c.l.b16 %v1163
    %v1352 = vunpack.c.h.b16 %v1163
    %v1353 = vunpack.c.l.b16 %v1164
    %v1354 = vunpack.c.h.b16 %v1164
    %v1355 = vunpack.c.l.b16 %v1165
    %v1356 = vunpack.c.h.b16 %v1165
    %v1357 = vunpack.c.l.b16 %v1166
    %v1358 = vunpack.c.h.b16 %v1166
    %v1359 = vpack.c.b16 %v1235, %v1231
    %v1360 = vpack.c.b16 %v1236, %v1232
    %v1361 = vpack.c.b16 %v1237, %v1233
    %v1362 = vpack.c.b16 %v1238, %v1234
    %v1363 = vpack.c.b16 %v1243, %v1239
    %v1364 = vpack.c.b16 %v1244, %v1240
    %v1365 = vpack.c.b16 %v1245, %v1241
    %v1366 = vpack.c.b16 %v1246, %v1242
    %v1367 = vpack.c.b16 %v1251, %v1247
    %v1368 = vpack.c.b16 %v1252, %v1248
    %v1369 = vpack.c.b16 %v1253, %v1249
    %v1370 = vpack.c.b16 %v1254, %v1250
    %v1371 = vpack.c.b16 %v1259, %v1255
    %v1372 = vpack.c.b16 %v1260, %v1256
    %v1373 = vpack.c.b16 %v1261, %v1257
    %v1374 = vpack.c.b16 %v1262, %v1258
    %v1375 = vpack.c.b16 %v1267, %v1263
    %v1376 = vpack.c.b16 %v1268, %v1264
    %v1377 = vpack.c.b16 %v1269, %v1265
    %v1378 = vpack.c.b16 %v1270, %v1266
    %v1379 = vpack.c.b16 %v1275, %v1271
    %v1380 = vpack.c.b16 %v1276, %v1272
    %v1381 = vpack.c.b16 %v1277, %v1273
    %v1382 = vpack.c.b16 %v1278, %v1274
    %v1383 = vpack.c.b16 %v1283, %v1279
    %v1384 = vpack.c.b16 %v1284, %v1280
    %v1385 = vpack.c.b16 %v1285, %v1281
    %v1386 = vpack.c.b16 %v1286, %v1282
    %v1387 = vpack.c.b16 %v1291, %v1287
    %v1388 = vpack.c.b16 %v1292, %v1288
    %v1389 = vpack.c.b16 %v1293, %v1289
    %v1390 = vpack.c.b16 %v1294, %v1290
    %v1391 = vpack.c.b16 %v1299, %v1295
    %v1392 = vpack.c.b16 %v1300, %v1296
    %v1393 = vpack.c.b16 %v1301, %v1297
    %v1394 = vpack.c.b16 %v1302, %v1298
    %v1395 = vpack.c.b16 %v1307, %v1303
    %v1396 = vpack.c.b16 %v1308, %v1304
    %v1397 = vpack.c.b16 %v1309, %v1305
    %v1398 = vpack.c.b16 %v1310, %v1306
    %v1399 = vpack.c.b16 %v1315, %v1311
    %v1400 = vpack.c.b16 %v1316, %v1312
    %v1401 = vpack.c.b16 %v1317, %v1313
    %v1402 = vpack.c.b16 %v1318, %v1314
    %v1403 = vpack.c.b16 %v1323, %v1319
    %v1404 = vpack.c.b16 %v1324, %v1320
    %v1405 = vpack.c.b16 %v1325, %v1321
    %v1406 = vpack.c.b16 %v1326, %v1322
    %v1407 = vpack.c.b16 %v1331, %v1327
    %v1408 = vpack.c.b16 %v1332, %v1328
    %v1409 = vpack.c.b16 %v1333, %v1329
    %v1410 = vpack.c.b16 %v1334, %v1330
    %v1411 = vpack.c.b16 %v1339, %v1335
    %v1412 = vpack.c.b16 %v1340, %v1336
    %v1413 = vpack.c.b16 %v1341, %v1337
    %v1414 = vpack.c.b16 %v1342, %v1338
    %v1415 = vpack.c.b16 %v1347, %v1343
    %v1416 = vpack.c.b16 %v1348, %v1344
    %v1417 = vpack.c.b16 %v1349, %v1345
    %v1418 = vpack.c.b16 %v1350, %v1346
    %v1419 = vpack.c.b16 %v1355, %v1351
    %v1420 = vpack.c.b16 %v1356, %v1352
    %v1421 = vpack.c.b16 %v1357, %v1353
    %v1422 = vpack.c.b16 %v1358, %v1354
    %1487 = vmatpush.bf16.msra.mxu0 %v1387
    %1488 = vmatpush.bf16.msra.mxu0 %v1383
    %1489 = vmatpush.bf16.msra.mxu0 %v1379
    %1490 = vmatpush.bf16.msra.mxu0 %v1375
    %1491 = vmatpush.bf16.msra.mxu0 %v1371
    %1492 = vmatpush.bf16.msra.mxu0 %v1367
    %1493 = vmatpush.bf16.msra.mxu0 %v1363
    %1494 = vmatpush.bf16.msra.mxu0 %v1359
    %1495 = vmatmul.bf16.gmra.mxu0 %v1101
    %v1496 = vpop.f32.mrf.mxu0
    %v1497 = vadd.f32 0.0, %v1496
    %v1498 = vpop.f32.mrf.mxu0
    %1499 = vdwg.mxu0
    %1500 = vmatpush.bf16.msra.mxu0 %v1419
    %1501 = vmatpush.bf16.msra.mxu0 %v1415
    %1502 = vmatpush.bf16.msra.mxu0 %v1411
    %1503 = vmatpush.bf16.msra.mxu0 %v1407
    %1504 = vmatpush.bf16.msra.mxu0 %v1403
    %1505 = vmatpush.bf16.msra.mxu0 %v1399
    %1506 = vmatpush.bf16.msra.mxu0 %v1395
    %1507 = vmatpush.bf16.msra.mxu0 %v1391
    %1508 = vmatmul.bf16.gmra.mxu0 %v1102
    %v1509 = vpop.f32.mrf.mxu0
    %v1510 = vadd.f32 %v1497, %v1509
    %v1511 = vpop.f32.mrf.mxu0
    %1512 = vdwg.mxu0
    %1513 = vmatpush.bf16.msra.mxu0 %v1388
    %1514 = vmatpush.bf16.msra.mxu0 %v1384
    %1515 = vmatpush.bf16.msra.mxu0 %v1380
    %1516 = vmatpush.bf16.msra.mxu0 %v1376
    %1517 = vmatpush.bf16.msra.mxu0 %v1372
    %1518 = vmatpush.bf16.msra.mxu0 %v1368
    %1519 = vmatpush.bf16.msra.mxu0 %v1364
    %1520 = vmatpush.bf16.msra.mxu0 %v1360
    %1521 = vmatmul.bf16.gmra.mxu0 %v1101
    %v1522 = vpop.f32.mrf.mxu0
    %v1523 = vadd.f32 0.0, %v1522
    %v1524 = vpop.f32.mrf.mxu0
    %1525 = vdwg.mxu0
    %1526 = vmatpush.bf16.msra.mxu0 %v1420
    %1527 = vmatpush.bf16.msra.mxu0 %v1416
    %1528 = vmatpush.bf16.msra.mxu0 %v1412
    %1529 = vmatpush.bf16.msra.mxu0 %v1408
    %1530 = vmatpush.bf16.msra.mxu0 %v1404
    %1531 = vmatpush.bf16.msra.mxu0 %v1400
    %1532 = vmatpush.bf16.msra.mxu0 %v1396
    %1533 = vmatpush.bf16.msra.mxu0 %v1392
    %1534 = vmatmul.bf16.gmra.mxu0 %v1102
    %v1535 = vpop.f32.mrf.mxu0
    %v1536 = vadd.f32 %v1523, %v1535
    %v1537 = vpop.f32.mrf.mxu0
    %1538 = vdwg.mxu0
    %1539 = vmatpush.bf16.msra.mxu0 %v1389
    %1540 = vmatpush.bf16.msra.mxu0 %v1385
    %1541 = vmatpush.bf16.msra.mxu0 %v1381
    %1542 = vmatpush.bf16.msra.mxu0 %v1377
    %1543 = vmatpush.bf16.msra.mxu0 %v1373
    %1544 = vmatpush.bf16.msra.mxu0 %v1369
    %1545 = vmatpush.bf16.msra.mxu0 %v1365
    %1546 = vmatpush.bf16.msra.mxu0 %v1361
    %1547 = vmatmul.bf16.gmra.mxu0 %v1101
    %v1548 = vpop.f32.mrf.mxu0
    %v1549 = vadd.f32 0.0, %v1548
    %v1550 = vpop.f32.mrf.mxu0
    %1551 = vdwg.mxu0
    %1552 = vmatpush.bf16.msra.mxu0 %v1421
    %1553 = vmatpush.bf16.msra.mxu0 %v1417
    %1554 = vmatpush.bf16.msra.mxu0 %v1413
    %1555 = vmatpush.bf16.msra.mxu0 %v1409
    %1556 = vmatpush.bf16.msra.mxu0 %v1405
    %1557 = vmatpush.bf16.msra.mxu0 %v1401
    %1558 = vmatpush.bf16.msra.mxu0 %v1397
    %1559 = vmatpush.bf16.msra.mxu0 %v1393
    %1560 = vmatmul.bf16.gmra.mxu0 %v1102
    %v1561 = vpop.f32.mrf.mxu0
    %v1562 = vadd.f32 %v1549, %v1561
    %v1563 = vpop.f32.mrf.mxu0
    %1564 = vdwg.mxu0
    %1565 = vmatpush.bf16.msra.mxu0 %v1390
    %1566 = vmatpush.bf16.msra.mxu0 %v1386
    %1567 = vmatpush.bf16.msra.mxu0 %v1382
    %1568 = vmatpush.bf16.msra.mxu0 %v1378
    %1569 = vmatpush.bf16.msra.mxu0 %v1374
    %1570 = vmatpush.bf16.msra.mxu0 %v1370
    %1571 = vmatpush.bf16.msra.mxu0 %v1366
    %1572 = vmatpush.bf16.msra.mxu0 %v1362
    %1573 = vmatmul.bf16.gmra.mxu0 %v1101
    %v1574 = vpop.f32.mrf.mxu0
    %v1575 = vadd.f32 0.0, %v1574
    %v1576 = vpop.f32.mrf.mxu0
    %1577 = vdwg.mxu0
    %1578 = vmatpush.bf16.msra.mxu0 %v1422
    %1579 = vmatpush.bf16.msra.mxu0 %v1418
    %1580 = vmatpush.bf16.msra.mxu0 %v1414
    %1581 = vmatpush.bf16.msra.mxu0 %v1410
    %1582 = vmatpush.bf16.msra.mxu0 %v1406
    %1583 = vmatpush.bf16.msra.mxu0 %v1402
    %1584 = vmatpush.bf16.msra.mxu0 %v1398
    %1585 = vmatpush.bf16.msra.mxu0 %v1394
    %1586 = vmatmul.bf16.gmra.mxu0 %v1102
    %v1587 = vpop.f32.mrf.mxu0
    %v1588 = vadd.f32 %v1575, %v1587
    %v1589 = vpop.f32.mrf.mxu0
    %1590 = vdwg.mxu0
    %vm1591 = vcmask 1041408
    %v1592 = vsel %vm1591, %v1510, 0.0
    %v1593 = vrot.slane %v1592, 4
    %v1594 = vadd.f32 %v1592, %v1593
    %v1595 = vrot.slane %v1594, 2
    %v1596 = vadd.f32 %v1594, %v1595
    %v1597 = vrot.slane %v1596, 1
    %v1598 = vadd.f32 %v1596, %v1597
    %v1599 = vsel %vm1591, %v1536, 0.0
    %v1600 = vrot.slane %v1599, 4
    %v1601 = vadd.f32 %v1599, %v1600
    %v1602 = vrot.slane %v1601, 2
    %v1603 = vadd.f32 %v1601, %v1602
    %v1604 = vrot.slane %v1603, 1
    %v1605 = vadd.f32 %v1603, %v1604
    %v1606 = vsel %vm1591, %v1562, 0.0
    %v1607 = vrot.slane %v1606, 4
    %v1608 = vadd.f32 %v1606, %v1607
    %v1609 = vrot.slane %v1608, 2
    %v1610 = vadd.f32 %v1608, %v1609
    %v1611 = vrot.slane %v1610, 1
    %v1612 = vadd.f32 %v1610, %v1611
    %v1613 = vsel %vm1591, %v1588, 0.0
    %v1614 = vrot.slane %v1613, 4
    %v1615 = vadd.f32 %v1613, %v1614
    %v1616 = vrot.slane %v1615, 2
    %v1617 = vadd.f32 %v1615, %v1616
    %v1618 = vrot.slane %v1617, 1
    %v1619 = vadd.f32 %v1617, %v1618
    %v1620 = vrcp.pop 2.0
    %v1621 = vmul.f32 2.0, %v1620
    %v1622 = vsub.f32 1.0, %v1621
    %v1623 = vmul.f32 %v1620, %v1622
    %v1624 = vadd.f32 %v1620, %v1623
    %vm1625 = vweird.f32 %v1620
    %v1626 = vsel %vm1625, %v1620, %v1624
    %v1627 = vmul.f32 %v1598, %v1626
    %v1628 = vmul.f32 %v1605, %v1626
    %v1629 = vmul.f32 %v1612, %v1626
    %v1630 = vmul.f32 %v1619, %v1626
    %v1631 = vsub.f32 %v1510, %v1627
    %v1632 = vsub.f32 %v1536, %v1628
    %v1633 = vsub.f32 %v1562, %v1629
    %v1634 = vsub.f32 %v1588, %v1630
    %v1635 = vmul.f32 %v1631, %v1631
    %v1636 = vmul.f32 %v1632, %v1632
    %v1637 = vmul.f32 %v1633, %v1633
    %v1638 = vmul.f32 %v1634, %v1634
    %v1639 = vsel %vm1591, %v1635, 0.0
    %v1640 = vrot.slane %v1639, 4
    %v1641 = vadd.f32 %v1639, %v1640
    %v1642 = vrot.slane %v1641, 2
    %v1643 = vadd.f32 %v1641, %v1642
    %v1644 = vrot.slane %v1643, 1
    %v1645 = vadd.f32 %v1643, %v1644
    %v1646 = vsel %vm1591, %v1636, 0.0
    %v1647 = vrot.slane %v1646, 4
    %v1648 = vadd.f32 %v1646, %v1647
    %v1649 = vrot.slane %v1648, 2
    %v1650 = vadd.f32 %v1648, %v1649
    %v1651 = vrot.slane %v1650, 1
    %v1652 = vadd.f32 %v1650, %v1651
    %v1653 = vsel %vm1591, %v1637, 0.0
    %v1654 = vrot.slane %v1653, 4
    %v1655 = vadd.f32 %v1653, %v1654
    %v1656 = vrot.slane %v1655, 2
    %v1657 = vadd.f32 %v1655, %v1656
    %v1658 = vrot.slane %v1657, 1
    %v1659 = vadd.f32 %v1657, %v1658
    %v1660 = vsel %vm1591, %v1638, 0.0
    %v1661 = vrot.slane %v1660, 4
    %v1662 = vadd.f32 %v1660, %v1661
    %v1663 = vrot.slane %v1662, 2
    %v1664 = vadd.f32 %v1662, %v1663
    %v1665 = vrot.slane %v1664, 1
    %v1666 = vadd.f32 %v1664, %v1665
    %v1667 = vmul.f32 %v1645, %v1626
    %v1668 = vmul.f32 %v1652, %v1626
    %v1669 = vmul.f32 %v1659, %v1626
    %v1670 = vmul.f32 %v1666, %v1626
    %v1671 = vadd.f32 %v1667, 1e-05
    %v1672 = vadd.f32 %v1668, 1e-05
    %v1673 = vadd.f32 %v1669, 1e-05
    %v1674 = vadd.f32 %v1670, 1e-05
    %v1675 = vrsqrt.pop %v1671
    %v1676 = vmul.f32 %v1675, %v1671
    %v1677 = vmul.f32 %v1676, %v1675
    %v1678 = vmul.f32 0.5, %v1677
    %v1679 = vsub.f32 1.5, %v1678
    %v1680 = vmul.f32 %v1675, %v1679
    %vm1681 = vweird.f32 %v1671
    %vm1682 = vweird.f32 %v1675
    %vm1683 = vmor %vm1681, %vm1682
    %v1684 = vsel %vm1683, %v1675, %v1680
    %v1685 = vrsqrt.pop %v1672
    %v1686 = vmul.f32 %v1685, %v1672
    %v1687 = vmul.f32 %v1686, %v1685
    %v1688 = vmul.f32 0.5, %v1687
    %v1689 = vsub.f32 1.5, %v1688
    %v1690 = vmul.f32 %v1685, %v1689
    %vm1691 = vweird.f32 %v1672
    %vm1692 = vweird.f32 %v1685
    %vm1693 = vmor %vm1691, %vm1692
    %v1694 = vsel %vm1693, %v1685, %v1690
    %v1695 = vrsqrt.pop %v1673
    %v1696 = vmul.f32 %v1695, %v1673
    %v1697 = vmul.f32 %v1696, %v1695
    %v1698 = vmul.f32 0.5, %v1697
    %v1699 = vsub.f32 1.5, %v1698
    %v1700 = vmul.f32 %v1695, %v1699
    %vm1701 = vweird.f32 %v1673
    %vm1702 = vweird.f32 %v1695
    %vm1703 = vmor %vm1701, %vm1702
    %v1704 = vsel %vm1703, %v1695, %v1700
    %v1705 = vrsqrt.pop %v1674
    %v1706 = vmul.f32 %v1705, %v1674
    %v1707 = vmul.f32 %v1706, %v1705
    %v1708 = vmul.f32 0.5, %v1707
    %v1709 = vsub.f32 1.5, %v1708
    %v1710 = vmul.f32 %v1705, %v1709
    %vm1711 = vweird.f32 %v1674
    %vm1712 = vweird.f32 %v1705
    %vm1713 = vmor %vm1711, %vm1712
    %v1714 = vsel %vm1713, %v1705, %v1710
    %v1719 = vrot.slane %v1694, 7
    %v1720 = vrot.slane %v1704, 6
    %v1721 = vrot.slane %v1714, 5
    %vm1722 = vcmask 1040384
    %v1723 = vsel %vm1722, %v1684, %v1719
    %vm1724 = vcmask 1042434
    %v1725 = vsel %vm1724, %v1720, %v1721
    %v1726 = vsel %vm1591, %v1723, %v1725
    %v1728 = vmul.f32 %v96, %v1726
    %v1730 = vperm.slane %v1728, 0
    %v1731 = vperm.slane %v1728, 1
    %v1732 = vperm.slane %v1728, 2
    %v1733 = vperm.slane %v1728, 3
    %v1738 = vmul.f32 %v1631, %v1730
    %v1739 = vmul.f32 %v1632, %v1731
    %v1740 = vmul.f32 %v1633, %v1732
    %v1741 = vmul.f32 %v1634, %v1733
    %v1743 = vperm.slane %v97, 0
    %v1744 = vperm.slane %v97, 1
    %v1745 = vperm.slane %v97, 2
    %v1746 = vperm.slane %v97, 3
    %v1751 = vadd.f32 %v1738, %v1743
    %v1752 = vadd.f32 %v1739, %v1744
    %v1753 = vadd.f32 %v1740, %v1745
    %v1754 = vadd.f32 %v1741, %v1746
    %v1755 = vmax.f32 %v1751, 0.0
    %v1756 = vmax.f32 %v1752, 0.0
    %v1757 = vmax.f32 %v1753, 0.0
    %v1758 = vmax.f32 %v1754, 0.0
    %v1759 = vpack.c.bf16 %v1755, %v1755
    %v1760 = vpack.c.bf16 %v1756, %v1756
    %v1761 = vpack.c.bf16 %v1757, %v1757
    %v1762 = vpack.c.bf16 %v1758, %v1758
    %v1763 = vld [vmem:[#allocation8] sm:$0xf]
    %v1764 = vld [vmem:[#allocation8 + $0x4] sm:$0xf]
    %v1765 = vld [vmem:[#allocation8 + $0x8] sm:$0xf]
    %v1766 = vld [vmem:[#allocation8 + $0xc] sm:$0xf]
    %v1767 = vld [vmem:[#allocation8 + $0x10] sm:$0xf]
    %v1768 = vld [vmem:[#allocation8 + $0x14] sm:$0xf]
    %v1769 = vld [vmem:[#allocation8 + $0x18] sm:$0xf]
    %v1770 = vld [vmem:[#allocation8 + $0x1c] sm:$0xf]
    %v1771 = vld [vmem:[#allocation8 + $0x20] sm:$0xf]
    %v1772 = vld [vmem:[#allocation8 + $0x24] sm:$0xf]
    %v1773 = vld [vmem:[#allocation8 + $0x28] sm:$0xf]
    %v1774 = vld [vmem:[#allocation8 + $0x2c] sm:$0xf]
    %v1775 = vld [vmem:[#allocation8 + $0x30] sm:$0xf]
    %v1776 = vld [vmem:[#allocation8 + $0x34] sm:$0xf]
    %v1777 = vld [vmem:[#allocation8 + $0x38] sm:$0xf]
    %v1778 = vld [vmem:[#allocation8 + $0x3c] sm:$0xf]
    %v1779 = vld [vmem:[#allocation8 + $0x40] sm:$0xf]
    %v1780 = vld [vmem:[#allocation8 + $0x44] sm:$0xf]
    %v1781 = vld [vmem:[#allocation8 + $0x48] sm:$0xf]
    %v1782 = vld [vmem:[#allocation8 + $0x4c] sm:$0xf]
    %v1783 = vld [vmem:[#allocation8 + $0x50] sm:$0xf]
    %v1784 = vld [vmem:[#allocation8 + $0x54] sm:$0xf]
    %v1785 = vld [vmem:[#allocation8 + $0x58] sm:$0xf]
    %v1786 = vld [vmem:[#allocation8 + $0x5c] sm:$0xf]
    %v1787 = vld [vmem:[#allocation8 + $0x60] sm:$0xf]
    %v1788 = vld [vmem:[#allocation8 + $0x64] sm:$0xf]
    %v1789 = vld [vmem:[#allocation8 + $0x68] sm:$0xf]
    %v1790 = vld [vmem:[#allocation8 + $0x6c] sm:$0xf]
    %v1791 = vld [vmem:[#allocation8 + $0x70] sm:$0xf]
    %v1792 = vld [vmem:[#allocation8 + $0x74] sm:$0xf]
    %v1793 = vld [vmem:[#allocation8 + $0x78] sm:$0xf]
    %v1794 = vld [vmem:[#allocation8 + $0x7c] sm:$0xf]
    %v1795 = vld [vmem:[#allocation8 + $0x80] sm:$0xf]
    %v1796 = vld [vmem:[#allocation8 + $0x84] sm:$0xf]
    %v1797 = vld [vmem:[#allocation8 + $0x88] sm:$0xf]
    %v1798 = vld [vmem:[#allocation8 + $0x8c] sm:$0xf]
    %v1799 = vld [vmem:[#allocation8 + $0x90] sm:$0xf]
    %v1800 = vld [vmem:[#allocation8 + $0x94] sm:$0xf]
    %v1801 = vld [vmem:[#allocation8 + $0x98] sm:$0xf]
    %v1802 = vld [vmem:[#allocation8 + $0x9c] sm:$0xf]
    %v1803 = vld [vmem:[#allocation8 + $0xa0] sm:$0xf]
    %v1804 = vld [vmem:[#allocation8 + $0xa4] sm:$0xf]
    %v1805 = vld [vmem:[#allocation8 + $0xa8] sm:$0xf]
    %v1806 = vld [vmem:[#allocation8 + $0xac] sm:$0xf]
    %v1807 = vld [vmem:[#allocation8 + $0xb0] sm:$0xf]
    %v1808 = vld [vmem:[#allocation8 + $0xb4] sm:$0xf]
    %v1809 = vld [vmem:[#allocation8 + $0xb8] sm:$0xf]
    %v1810 = vld [vmem:[#allocation8 + $0xbc] sm:$0xf]
    %v1811 = vld [vmem:[#allocation8 + $0xc0] sm:$0xf]
    %v1812 = vld [vmem:[#allocation8 + $0xc4] sm:$0xf]
    %v1813 = vld [vmem:[#allocation8 + $0xc8] sm:$0xf]
    %v1814 = vld [vmem:[#allocation8 + $0xcc] sm:$0xf]
    %v1815 = vld [vmem:[#allocation8 + $0xd0] sm:$0xf]
    %v1816 = vld [vmem:[#allocation8 + $0xd4] sm:$0xf]
    %v1817 = vld [vmem:[#allocation8 + $0xd8] sm:$0xf]
    %v1818 = vld [vmem:[#allocation8 + $0xdc] sm:$0xf]
    %v1819 = vld [vmem:[#allocation8 + $0xe0] sm:$0xf]
    %v1820 = vld [vmem:[#allocation8 + $0xe4] sm:$0xf]
    %v1821 = vld [vmem:[#allocation8 + $0xe8] sm:$0xf]
    %v1822 = vld [vmem:[#allocation8 + $0xec] sm:$0xf]
    %v1823 = vld [vmem:[#allocation8 + $0xf0] sm:$0xf]
    %v1824 = vld [vmem:[#allocation8 + $0xf4] sm:$0xf]
    %v1825 = vld [vmem:[#allocation8 + $0xf8] sm:$0xf]
    %v1826 = vld [vmem:[#allocation8 + $0xfc] sm:$0xf]
    %v1828 = vperm.slane %v98, 0
    %v1894 = vunpack.c.l.b16 %v1763
    %v1895 = vunpack.c.l.b16 %v1764
    %v1896 = vunpack.c.l.b16 %v1765
    %v1897 = vunpack.c.l.b16 %v1766
    %v1898 = vunpack.c.l.b16 %v1767
    %v1899 = vunpack.c.l.b16 %v1768
    %v1900 = vunpack.c.l.b16 %v1769
    %v1901 = vunpack.c.l.b16 %v1770
    %v1902 = vunpack.c.l.b16 %v1771
    %v1903 = vunpack.c.l.b16 %v1772
    %v1904 = vunpack.c.l.b16 %v1773
    %v1905 = vunpack.c.l.b16 %v1774
    %v1906 = vunpack.c.l.b16 %v1775
    %v1907 = vunpack.c.l.b16 %v1776
    %v1908 = vunpack.c.l.b16 %v1777
    %v1909 = vunpack.c.l.b16 %v1778
    %v1910 = vunpack.c.l.b16 %v1779
    %v1911 = vunpack.c.l.b16 %v1780
    %v1912 = vunpack.c.l.b16 %v1781
    %v1913 = vunpack.c.l.b16 %v1782
    %v1914 = vunpack.c.l.b16 %v1783
    %v1915 = vunpack.c.l.b16 %v1784
    %v1916 = vunpack.c.l.b16 %v1785
    %v1917 = vunpack.c.l.b16 %v1786
    %v1918 = vunpack.c.l.b16 %v1787
    %v1919 = vunpack.c.l.b16 %v1788
    %v1920 = vunpack.c.l.b16 %v1789
    %v1921 = vunpack.c.l.b16 %v1790
    %v1922 = vunpack.c.l.b16 %v1791
    %v1923 = vunpack.c.l.b16 %v1792
    %v1924 = vunpack.c.l.b16 %v1793
    %v1925 = vunpack.c.l.b16 %v1794
    %v1926 = vunpack.c.l.b16 %v1795
    %v1927 = vunpack.c.l.b16 %v1796
    %v1928 = vunpack.c.l.b16 %v1797
    %v1929 = vunpack.c.l.b16 %v1798
    %v1930 = vunpack.c.l.b16 %v1799
    %v1931 = vunpack.c.l.b16 %v1800
    %v1932 = vunpack.c.l.b16 %v1801
    %v1933 = vunpack.c.l.b16 %v1802
    %v1934 = vunpack.c.l.b16 %v1803
    %v1935 = vunpack.c.l.b16 %v1804
    %v1936 = vunpack.c.l.b16 %v1805
    %v1937 = vunpack.c.l.b16 %v1806
    %v1938 = vunpack.c.l.b16 %v1807
    %v1939 = vunpack.c.l.b16 %v1808
    %v1940 = vunpack.c.l.b16 %v1809
    %v1941 = vunpack.c.l.b16 %v1810
    %v1942 = vunpack.c.l.b16 %v1811
    %v1943 = vunpack.c.l.b16 %v1812
    %v1944 = vunpack.c.l.b16 %v1813
    %v1945 = vunpack.c.l.b16 %v1814
    %v1946 = vunpack.c.l.b16 %v1815
    %v1947 = vunpack.c.l.b16 %v1816
    %v1948 = vunpack.c.l.b16 %v1817
    %v1949 = vunpack.c.l.b16 %v1818
    %v1950 = vunpack.c.l.b16 %v1819
    %v1951 = vunpack.c.l.b16 %v1820
    %v1952 = vunpack.c.l.b16 %v1821
    %v1953 = vunpack.c.l.b16 %v1822
    %v1954 = vunpack.c.l.b16 %v1823
    %v1955 = vunpack.c.l.b16 %v1824
    %v1956 = vunpack.c.l.b16 %v1825
    %v1957 = vunpack.c.l.b16 %v1826
    %v1958 = vpack.c.b16 %v1895, %v1894
    %v1959 = vpack.c.b16 %v1897, %v1896
    %v1960 = vpack.c.b16 %v1899, %v1898
    %v1961 = vpack.c.b16 %v1901, %v1900
    %v1962 = vpack.c.b16 %v1903, %v1902
    %v1963 = vpack.c.b16 %v1905, %v1904
    %v1964 = vpack.c.b16 %v1907, %v1906
    %v1965 = vpack.c.b16 %v1909, %v1908
    %v1966 = vpack.c.b16 %v1911, %v1910
    %v1967 = vpack.c.b16 %v1913, %v1912
    %v1968 = vpack.c.b16 %v1915, %v1914
    %v1969 = vpack.c.b16 %v1917, %v1916
    %v1970 = vpack.c.b16 %v1919, %v1918
    %v1971 = vpack.c.b16 %v1921, %v1920
    %v1972 = vpack.c.b16 %v1923, %v1922
    %v1973 = vpack.c.b16 %v1925, %v1924
    %v1974 = vpack.c.b16 %v1927, %v1926
    %v1975 = vpack.c.b16 %v1929, %v1928
    %v1976 = vpack.c.b16 %v1931, %v1930
    %v1977 = vpack.c.b16 %v1933, %v1932
    %v1978 = vpack.c.b16 %v1935, %v1934
    %v1979 = vpack.c.b16 %v1937, %v1936
    %v1980 = vpack.c.b16 %v1939, %v1938
    %v1981 = vpack.c.b16 %v1941, %v1940
    %v1982 = vpack.c.b16 %v1943, %v1942
    %v1983 = vpack.c.b16 %v1945, %v1944
    %v1984 = vpack.c.b16 %v1947, %v1946
    %v1985 = vpack.c.b16 %v1949, %v1948
    %v1986 = vpack.c.b16 %v1951, %v1950
    %v1987 = vpack.c.b16 %v1953, %v1952
    %v1988 = vpack.c.b16 %v1955, %v1954
    %v1989 = vpack.c.b16 %v1957, %v1956
    %2022 = vmatpush.bf16.msra.mxu0 %v1965
    %2023 = vmatpush.bf16.msra.mxu0 %v1964
    %2024 = vmatpush.bf16.msra.mxu0 %v1963
    %2025 = vmatpush.bf16.msra.mxu0 %v1962
    %2026 = vmatpush.bf16.msra.mxu0 %v1961
    %2027 = vmatpush.bf16.msra.mxu0 %v1960
    %2028 = vmatpush.bf16.msra.mxu0 %v1959
    %2029 = vmatpush.bf16.msra.mxu0 %v1958
    %2030 = vmatmul.bf16.gmra.mxu0 %v1759
    %v2031 = vpop.f32.mrf.mxu0
    %v2032 = vadd.f32 %v1828, %v2031
    %v2033 = vpop.f32.mrf.mxu0
    %2034 = vdwg.mxu0
    %2035 = vmatpush.bf16.msra.mxu0 %v1973
    %2036 = vmatpush.bf16.msra.mxu0 %v1972
    %2037 = vmatpush.bf16.msra.mxu0 %v1971
    %2038 = vmatpush.bf16.msra.mxu0 %v1970
    %2039 = vmatpush.bf16.msra.mxu0 %v1969
    %2040 = vmatpush.bf16.msra.mxu0 %v1968
    %2041 = vmatpush.bf16.msra.mxu0 %v1967
    %2042 = vmatpush.bf16.msra.mxu0 %v1966
    %2043 = vmatmul.bf16.gmra.mxu0 %v1760
    %v2044 = vpop.f32.mrf.mxu0
    %v2045 = vadd.f32 %v2032, %v2044
    %v2046 = vpop.f32.mrf.mxu0
    %2047 = vdwg.mxu0
    %2048 = vmatpush.bf16.msra.mxu0 %v1981
    %2049 = vmatpush.bf16.msra.mxu0 %v1980
    %2050 = vmatpush.bf16.msra.mxu0 %v1979
    %2051 = vmatpush.bf16.msra.mxu0 %v1978
    %2052 = vmatpush.bf16.msra.mxu0 %v1977
    %2053 = vmatpush.bf16.msra.mxu0 %v1976
    %2054 = vmatpush.bf16.msra.mxu0 %v1975
    %2055 = vmatpush.bf16.msra.mxu0 %v1974
    %2056 = vmatmul.bf16.gmra.mxu0 %v1761
    %v2057 = vpop.f32.mrf.mxu0
    %v2058 = vadd.f32 %v2045, %v2057
    %v2059 = vpop.f32.mrf.mxu0
    %2060 = vdwg.mxu0
    %2061 = vmatpush.bf16.msra.mxu0 %v1989
    %2062 = vmatpush.bf16.msra.mxu0 %v1988
    %2063 = vmatpush.bf16.msra.mxu0 %v1987
    %2064 = vmatpush.bf16.msra.mxu0 %v1986
    %2065 = vmatpush.bf16.msra.mxu0 %v1985
    %2066 = vmatpush.bf16.msra.mxu0 %v1984
    %2067 = vmatpush.bf16.msra.mxu0 %v1983
    %2068 = vmatpush.bf16.msra.mxu0 %v1982
    %2069 = vmatmul.bf16.gmra.mxu0 %v1762
    %v2070 = vpop.f32.mrf.mxu0
    %v2071 = vadd.f32 %v2058, %v2070
    %v2072 = vpop.f32.mrf.mxu0
    %2073 = vdwg.mxu0
    %2074 = vst [vmem:[#allocation11] sm:$0x3] %v2071
    // Predicated region
    $region42: #{tpu_custom_call.1} parent=1 // pred_check
      _
    $region43: #{tpu_custom_call.1} parent=1 // pred_check_branch
      %2076 = sbr.rel (0) target = $region45
    $region44: #{tpu_custom_call.1} parent=1 // pred_region
      %2078 = vsyncadd [#allocation4], 0
      %s2080 = sshll.u32 [#allocation11], 4
      %s2081 = int_to_ptr.vmem [resolvable:$true] %s2080
      %s2082 = sshll.u32 %s5, 4
      %s2083 = int_to_ptr.hbm [resolvable:$true] %s2082
      %2085 = dma.vmem_to_hbm [thread:$0]  %s2081, 32, %s2083, [#allocation4]
    $region45: #{tpu_custom_call.1} parent=1 // pred_fallthru
      _
    // Predicated region
    $region46: #{tpu_custom_call.1} parent=1 // pred_check
      _
    $region47: #{tpu_custom_call.1} parent=1 // pred_check_branch
      %2087 = sbr.rel (0) target = $region49
    $region48: #{tpu_custom_call.1} parent=1 // pred_region
      %2089 = dma.done [#allocation4], 32
    $region49: #{tpu_custom_call.1} parent=1 // pred_fallthru
      _
    %2090 = vsyncpa [#allocation3], 1
    %2091 = vsyncpa [#allocation6], 1
    %2092 = vsyncpa [#allocation9], 1
    %2093 = vsyncpa [#allocation4], 1

</llo_original>
